<compile_context>
chip_gen: v7x
topology: tpu7x:2x2x1
jax: 0.10.0
libtpu: 0.0.40
codegen_flags: <defaults>
</compile_context>

<pallas_src>
import jax
import jax.numpy as jnp
from jax.experimental import pallas as pl
from jax.experimental.pallas import tpu as pltpu

D_IN = 30
D_H1 = 256
D_H2 = 512
D_OUT = 95
D_OUT_PAD = 128            # lane-dense output width (unmasked vst)
NEG_BIG = -1e30            # padded-logit bias (kept in f32!) -> exp() == 0 exactly


def mlp_softmax_kernel(x_ref, w1_ref, b1_ref, w2_ref, b2_ref, w3_ref, b3_ref, o_ref):
    # in-kernel cast f32 -> bf16 (avoids a wrapper-side HBM round trip over x)
    x = x_ref[...].astype(jnp.bfloat16)
    # hidden 1: (tb, 30)bf16 @ (30, 256)bf16 -> f32 acc, +bias, ReLU
    h1 = jnp.dot(x, w1_ref[...], preferred_element_type=jnp.float32) + b1_ref[...]
    h1 = jnp.maximum(h1, 0.0).astype(jnp.bfloat16)
    # hidden 2: (tb, 256)bf16 @ (256, 512)bf16 -> f32 acc, +bias, ReLU
    h2 = jnp.dot(h1, w2_ref[...], preferred_element_type=jnp.float32) + b2_ref[...]
    h2 = jnp.maximum(h2, 0.0).astype(jnp.bfloat16)
    # logits: (tb, 512)bf16 @ (512, 128)bf16 -> f32 acc, +bias (padded cols biased to -1e30)
    logits = jnp.dot(h2, w3_ref[...], preferred_element_type=jnp.float32) + b3_ref[...]
    # numerically-stable softmax over the (padded, lane-dense) feature axis in f32
    m = jnp.max(logits, axis=-1, keepdims=True)
    e = jnp.exp(logits - m)
    inv = pl.reciprocal(jnp.sum(e, axis=-1, keepdims=True), approx=True)
    # bf16 store halves output HBM writeback; output stays lane-dense (128 wide)
    o_ref[...] = (e * inv).astype(o_ref.dtype)


def prepare_params(w1, b1, w2, b2, w3, b3):
    """One-time parameter prep (hoisted out of the forward path).

    bf16 weights for the MXU, f32 biases (added to the f32 accumulators),
    output features padded 95 -> 128: zero weight columns + -1e30 bias so the
    softmax assigns exactly 0 probability to the padded lanes.
    """
    assert w1.shape == (D_IN, D_H1) and w2.shape == (D_H1, D_H2) and w3.shape == (D_H2, D_OUT)
    w3p = jnp.pad(w3, ((0, 0), (0, D_OUT_PAD - D_OUT)))
    b3p = jnp.pad(b3, ((0, 0), (0, D_OUT_PAD - D_OUT)), constant_values=NEG_BIG)
    return (w1.astype(jnp.bfloat16), b1.astype(jnp.float32),
            w2.astype(jnp.bfloat16), b2.astype(jnp.float32),
            w3p.astype(jnp.bfloat16), b3p.astype(jnp.float32))


def mlp_forward(x, params, *, tb=None, out_dtype=jnp.bfloat16):
    """Forward pass. `params` must come from prepare_params()."""
    w1b, b1f, w2b, b2f, w3b, b3f = params
    B, d_in = x.shape
    assert d_in == D_IN

    if tb is None:
        # Small batch: one big tile (no per-grid-step overhead, single TC is fine).
        # Larger batch: tb=256 so the batch grid has >=2 parallel steps (v7x: 2 TCs).
        tb = B if B <= 256 else 256
    tb = -(-tb // 8) * 8                       # sublane multiple

    b_pad = -(-B // tb) * tb
    if b_pad != B:
        # Ragged-batch fallback; callers should pick tb | B to avoid this extra pad.
        x = jnp.pad(x, ((0, b_pad - B), (0, 0)))
    grid = (b_pad // tb,)

    flops = 2 * b_pad * (D_IN * D_H1 + D_H1 * D_H2 + D_H2 * D_OUT_PAD)
    bytes_accessed = (x.size * 4
                      + (w1b.size + w2b.size + w3b.size) * 2
                      + (b1f.size + b2f.size + b3f.size) * 4
                      + b_pad * D_OUT_PAD * jnp.dtype(out_dtype).itemsize)
    cost = pl.CostEstimate(flops=flops,
                           transcendentals=b_pad * D_OUT_PAD,
                           bytes_accessed=bytes_accessed)

    # Weights/biases: fully resident, constant index_map -> single-buffered (no dead
    # second VMEM buffer; buys tiling headroom on v7x's 64 MiB VMEM).
    def resident(shape):
        return pl.BlockSpec(shape, lambda i: (0, 0), pipeline_mode=pl.Buffered(1))

    out_pad = pl.pallas_call(
        mlp_softmax_kernel,
        out_shape=jax.ShapeDtypeStruct((b_pad, D_OUT_PAD), out_dtype),
        grid_spec=pltpu.PrefetchScalarGridSpec(
            num_scalar_prefetch=0,
            grid=grid,
            in_specs=[
                pl.BlockSpec((tb, D_IN), lambda i: (i, 0)),   # x tile (batch-tiled, f32)
                resident(w1b.shape), resident(b1f.shape),
                resident(w2b.shape), resident(b2f.shape),
                resident(w3b.shape), resident(b3f.shape),
            ],
            out_specs=pl.BlockSpec((tb, D_OUT_PAD), lambda i: (i, 0)),
        ),
        compiler_params=pltpu.CompilerParams(dimension_semantics=("parallel",)),
        cost_estimate=cost,
    )(x, w1b, b1f, w2b, b2f, w3b, b3f)

    # Slice off the padded feature lanes (and any padded batch rows).
    return out_pad[:B, :D_OUT]


def init_linear_params(key, fan_in, fan_out):
    # Deterministic init mimicking torch.nn.Linear default: U(-1/sqrt(fan_in), +1/sqrt(fan_in)).
    kw, kb = jax.random.split(key)
    bound = 1.0 / jnp.sqrt(jnp.float32(fan_in))
    w = jax.random.uniform(kw, (fan_in, fan_out), jnp.float32, -bound, bound)
    b = jax.random.uniform(kb, (1, fan_out), jnp.float32, -bound, bound)
    return w, b


def reference_forward(x, w1, b1, w2, b2, w3, b3):
    # Pure-JAX reference mirroring the kernel's bf16-input / f32-accumulate numerics.
    bf = lambda a: a.astype(jnp.bfloat16).astype(jnp.float32)
    h1 = jnp.maximum(bf(x) @ bf(w1) + b1, 0.0)
    h2 = jnp.maximum(bf(h1) @ bf(w2) + b2, 0.0)
    logits = bf(h2) @ bf(w3) + b3
    return jax.nn.softmax(logits, axis=-1)


if __name__ == "__main__":
    key = jax.random.PRNGKey(0)
    k_x, k1, k2, k3 = jax.random.split(key, 4)

    B, TB = 512, 256                    # grid = (2,): full MXU tiles, both v7x TCs busy, tb | B
    x = jax.random.normal(k_x, (B, D_IN), jnp.float32)

    w1, b1 = init_linear_params(k1, D_IN, D_H1)
    w2, b2 = init_linear_params(k2, D_H1, D_H2)
    w3, b3 = init_linear_params(k3, D_H2, D_OUT)

    params = prepare_params(w1, b1, w2, b2, w3, b3)   # one-time prep, not per forward

    out = mlp_forward(x, params, tb=TB)
    out = jax.block_until_ready(out)

    ref = reference_forward(x, w1, b1, w2, b2, w3, b3)
    outf = out.astype(jnp.float32)

    assert out.shape == (B, D_OUT)
    assert jnp.all(jnp.isfinite(outf))
    # bf16 matmuls + bf16 output store + approx reciprocal -> loose-ish tolerances
    assert jnp.allclose(outf, ref, atol=1e-2, rtol=2e-2)
    assert jnp.allclose(jnp.sum(outf, axis=-1), 1.0, atol=1e-2)
    print("KERNEL_OK")
</pallas_src>

<mosaic_0001>
module attributes {stable_mosaic.version = 11 : i64} {
  func.func @mlp_softmax_kernel(%arg0: i32, %arg1: memref<256x30xf32, #tpu.memory_space<vmem>>, %arg2: memref<30x256xbf16, #tpu.memory_space<vmem>>, %arg3: memref<1x256xf32, #tpu.memory_space<vmem>>, %arg4: memref<256x512xbf16, #tpu.memory_space<vmem>>, %arg5: memref<1x512xf32, #tpu.memory_space<vmem>>, %arg6: memref<512x128xbf16, #tpu.memory_space<vmem>>, %arg7: memref<1x128xf32, #tpu.memory_space<vmem>>, %arg8: memref<256x128xbf16, #tpu.memory_space<vmem>>) attributes {dimension_semantics = [#tpu.dimension_semantics<parallel>], iteration_bounds = array<i64: 2>, scalar_prefetch = 0 : i64, scratch_operands = 0 : i64, tpu.core_type = #tpu.core_type<tc>, window_params = [{transform_indices = @transform_0, window_bounds = array<i64: 256, 30>}, {pipeline_mode = #tpu.pipeline_mode<synchronous>, transform_indices = @transform_1, window_bounds = array<i64: 30, 256>}, {pipeline_mode = #tpu.pipeline_mode<synchronous>, transform_indices = @transform_2, window_bounds = array<i64: 1, 256>}, {pipeline_mode = #tpu.pipeline_mode<synchronous>, transform_indices = @transform_3, window_bounds = array<i64: 256, 512>}, {pipeline_mode = #tpu.pipeline_mode<synchronous>, transform_indices = @transform_4, window_bounds = array<i64: 1, 512>}, {pipeline_mode = #tpu.pipeline_mode<synchronous>, transform_indices = @transform_5, window_bounds = array<i64: 512, 128>}, {pipeline_mode = #tpu.pipeline_mode<synchronous>, transform_indices = @transform_6, window_bounds = array<i64: 1, 128>}, {transform_indices = @transform_7, window_bounds = array<i64: 256, 128>}]} {
    %c0 = arith.constant 0 : index
    %c0_0 = arith.constant 0 : index
    %0 = vector.load %arg1[%c0, %c0_0] : memref<256x30xf32, #tpu.memory_space<vmem>>, vector<256x30xf32>
    %1 = arith.truncf %0 : vector<256x30xf32> to vector<256x30xbf16>
    %c0_1 = arith.constant 0 : index
    %c0_2 = arith.constant 0 : index
    %2 = vector.load %arg2[%c0_1, %c0_2] : memref<30x256xbf16, #tpu.memory_space<vmem>>, vector<30x256xbf16>
    %cst = arith.constant dense<0.000000e+00> : vector<256x256xf32>
    %3 = tpu.matmul %1, %2, %cst {dimension_numbers = #tpu.dot_dimension_numbers<[1], [0], [0], [1], [0, 0, 1, 1], [], []>} : vector<256x30xbf16>, vector<30x256xbf16>, vector<256x256xf32> -> vector<256x256xf32>
    %c0_3 = arith.constant 0 : index
    %c0_4 = arith.constant 0 : index
    %4 = vector.load %arg3[%c0_3, %c0_4] : memref<1x256xf32, #tpu.memory_space<vmem>>, vector<1x256xf32>
    %5 = vector.broadcast %4 : vector<1x256xf32> to vector<256x256xf32>
    %6 = arith.addf %3, %5 : vector<256x256xf32>
    %cst_5 = arith.constant 0.000000e+00 : f32
    %7 = vector.broadcast %cst_5 : f32 to vector<256x256xf32>
    %8 = arith.maximumf %6, %7 : vector<256x256xf32>
    %9 = arith.truncf %8 : vector<256x256xf32> to vector<256x256xbf16>
    %c0_6 = arith.constant 0 : index
    %c0_7 = arith.constant 0 : index
    %10 = vector.load %arg4[%c0_6, %c0_7] : memref<256x512xbf16, #tpu.memory_space<vmem>>, vector<256x512xbf16>
    %cst_8 = arith.constant dense<0.000000e+00> : vector<256x512xf32>
    %11 = tpu.matmul %9, %10, %cst_8 {dimension_numbers = #tpu.dot_dimension_numbers<[1], [0], [0], [1], [0, 0, 1, 1], [], []>} : vector<256x256xbf16>, vector<256x512xbf16>, vector<256x512xf32> -> vector<256x512xf32>
    %c0_9 = arith.constant 0 : index
    %c0_10 = arith.constant 0 : index
    %12 = vector.load %arg5[%c0_9, %c0_10] : memref<1x512xf32, #tpu.memory_space<vmem>>, vector<1x512xf32>
    %13 = vector.broadcast %12 : vector<1x512xf32> to vector<256x512xf32>
    %14 = arith.addf %11, %13 : vector<256x512xf32>
    %cst_11 = arith.constant 0.000000e+00 : f32
    %15 = vector.broadcast %cst_11 : f32 to vector<256x512xf32>
    %16 = arith.maximumf %14, %15 : vector<256x512xf32>
    %17 = arith.truncf %16 : vector<256x512xf32> to vector<256x512xbf16>
    %c0_12 = arith.constant 0 : index
    %c0_13 = arith.constant 0 : index
    %18 = vector.load %arg6[%c0_12, %c0_13] : memref<512x128xbf16, #tpu.memory_space<vmem>>, vector<512x128xbf16>
    %cst_14 = arith.constant dense<0.000000e+00> : vector<256x128xf32>
    %19 = tpu.matmul %17, %18, %cst_14 {dimension_numbers = #tpu.dot_dimension_numbers<[1], [0], [0], [1], [0, 0, 1, 1], [], []>} : vector<256x512xbf16>, vector<512x128xbf16>, vector<256x128xf32> -> vector<256x128xf32>
    %c0_15 = arith.constant 0 : index
    %c0_16 = arith.constant 0 : index
    %20 = vector.load %arg7[%c0_15, %c0_16] : memref<1x128xf32, #tpu.memory_space<vmem>>, vector<1x128xf32>
    %21 = vector.broadcast %20 : vector<1x128xf32> to vector<256x128xf32>
    %22 = arith.addf %19, %21 : vector<256x128xf32>
    %cst_17 = arith.constant dense<0xFF800000> : vector<256xf32>
    %23 = vector.multi_reduction <maximumf>, %22, %cst_17 [1] : vector<256x128xf32> to vector<256xf32>
    %24 = vector.shape_cast %23 : vector<256xf32> to vector<256x1xf32>
    %25 = vector.broadcast %24 : vector<256x1xf32> to vector<256x128xf32>
    %26 = arith.subf %22, %25 : vector<256x128xf32>
    %27 = math.exp %26 : vector<256x128xf32>
    %cst_18 = arith.constant dense<0.000000e+00> : vector<256xf32>
    %28 = vector.multi_reduction <add>, %27, %cst_18 [1] : vector<256x128xf32> to vector<256xf32>
    %29 = vector.shape_cast %28 : vector<256xf32> to vector<256x1xf32>
    %30 = tpu.reciprocal %29 {approx = true} : vector<256x1xf32> -> vector<256x1xf32>
    %31 = vector.broadcast %30 : vector<256x1xf32> to vector<256x128xf32>
    %32 = arith.mulf %27, %31 : vector<256x128xf32>
    %33 = arith.truncf %32 : vector<256x128xf32> to vector<256x128xbf16>
    %c0_19 = arith.constant 0 : index
    %c0_20 = arith.constant 0 : index
    %34 = vector.load %arg8[%c0_19, %c0_20] : memref<256x128xbf16, #tpu.memory_space<vmem>>, vector<256x128xbf16>
    tpu.vector_store %arg8[%c0_19, %c0_20], %33 {strides = array<i32>} : memref<256x128xbf16, #tpu.memory_space<vmem>>, vector<256x128xbf16>,
    return
  }
  func.func @transform_0(%arg0: i32) -> (i32, i32) {
    %c0_i32 = arith.constant 0 : i32
    %c0_i32_0 = arith.constant 0 : i32
    return %arg0, %c0_i32 : i32, i32
  }
  func.func @transform_1(%arg0: i32) -> (i32, i32) {
    %c0_i32 = arith.constant 0 : i32
    %c0_i32_0 = arith.constant 0 : i32
    %c0_i32_1 = arith.constant 0 : i32
    return %c0_i32, %c0_i32_0 : i32, i32
  }
  func.func @transform_2(%arg0: i32) -> (i32, i32) {
    %c0_i32 = arith.constant 0 : i32
    %c0_i32_0 = arith.constant 0 : i32
    %c0_i32_1 = arith.constant 0 : i32
    return %c0_i32, %c0_i32_0 : i32, i32
  }
  func.func @transform_3(%arg0: i32) -> (i32, i32) {
    %c0_i32 = arith.constant 0 : i32
    %c0_i32_0 = arith.constant 0 : i32
    %c0_i32_1 = arith.constant 0 : i32
    return %c0_i32, %c0_i32_0 : i32, i32
  }
  func.func @transform_4(%arg0: i32) -> (i32, i32) {
    %c0_i32 = arith.constant 0 : i32
    %c0_i32_0 = arith.constant 0 : i32
    %c0_i32_1 = arith.constant 0 : i32
    return %c0_i32, %c0_i32_0 : i32, i32
  }
  func.func @transform_5(%arg0: i32) -> (i32, i32) {
    %c0_i32 = arith.constant 0 : i32
    %c0_i32_0 = arith.constant 0 : i32
    %c0_i32_1 = arith.constant 0 : i32
    return %c0_i32, %c0_i32_0 : i32, i32
  }
  func.func @transform_6(%arg0: i32) -> (i32, i32) {
    %c0_i32 = arith.constant 0 : i32
    %c0_i32_0 = arith.constant 0 : i32
    %c0_i32_1 = arith.constant 0 : i32
    return %c0_i32, %c0_i32_0 : i32, i32
  }
  func.func @transform_7(%arg0: i32) -> (i32, i32) {
    %c0_i32 = arith.constant 0 : i32
    %c0_i32_0 = arith.constant 0 : i32
    return %arg0, %c0_i32 : i32, i32
  }
}

</mosaic_0001>

<llo_original>
// kernel: tpu_custom_call.1
$region0: #{tpu_custom_call.1}
  #allocation0 [shape = 'u32[]', space=smem, size = 0x4, offset = 0x4, fixed_abs, tag = 'smem constant byte address 0x4 - core index']
  #allocation1 [shape = 'u32[144,128]{1,0:T(1,128)}', space=vmem, size = 0x12000, scoped, tag = 'internal scratch']
  %s0 = inlined_call_operand.vmem [shape: f32[512,30], index: 0, kind: input, shape index: {}]
  %s1 = inlined_call_operand.vmem [shape: bf16[30,256], index: 1, kind: input, shape index: {}]
  %s2 = inlined_call_operand.vmem [shape: f32[1,256], index: 2, kind: input, shape index: {}]
  %s3 = inlined_call_operand.vmem [shape: bf16[256,512], index: 3, kind: input, shape index: {}]
  %s4 = inlined_call_operand.vmem [shape: f32[1,512], index: 4, kind: input, shape index: {}]
  %s5 = inlined_call_operand.hbm [shape: bf16[512,128], index: 5, kind: input, shape index: {}]
  %s6 = inlined_call_operand.vmem [shape: f32[1,128], index: 6, kind: input, shape index: {}]
  %s7 = inlined_call_operand.hbm [shape: bf16[512,128], index: 7, kind: output, shape index: {}]
  %s8 = sld [smem:[#allocation0]]
  $region65: #{tpu_custom_call.1} parent=0
    _
  %s10 = ssub.s32 1, %s8
  %s11 = scalar_select 0, %s10, %s8
  $region1: #{tpu_custom_call.1} parent=0
    #allocation2 [shape = 'u8[131072]{0}', space=vmem, size = 0x20000, scoped, tag = 'input window, operand 5, single buffered']
    #allocation3 [shape = 's32[2]{0}', space=sflag, size = 0x8, scoped, tag = 'scoped memory for tpu_custom_call.1']
    #allocation4 [shape = 's32[2]{0}', space=sflag, size = 0x8, scoped, tag = 'scoped memory for tpu_custom_call.1']
    #allocation5 [shape = 'u8[131072]{0}', space=vmem, size = 0x20000, scoped, tag = 'output window, operand 0']
    %12 = vsyncpa [#allocation3], 0
    %13 = vsyncpa [#allocation4], 0
    %s14 = scalar_lea.sflag [#allocation4], 1
    %15 = vsyncpa %s14, 0
    loop: start=0, step=1, limit=4
    $region2: #{tpu_custom_call.1} parent=1 // loop_pre_header
      _
    $region3: #{tpu_custom_call.1} parent=1 // loop_header
      %s17 = sphi 0, %s21
      %p18 = scmp.ge.s32.totalorder %s17, 4
      %s27 = sphi 0, %s29
      %s30 = sphi 0, %s27
      %s31 = sphi 0, %s30
      %s47 = sphi 0, %s31
      %s51 = sphi 0, %s51
      %s53 = sphi 0, %s51
      %s54 = sphi 0, %s53
      %s68 = sphi 0, %s54
      %s72 = sphi 0, %s72
      %s74 = sphi 0, %s72
      %s75 = sphi 0, %s74
      %s89 = sphi 0, %s75
      %s93 = sphi 0, %s93
      %s95 = sphi 0, %s93
      %s96 = sphi 0, %s95
      %s110 = sphi 0, %s96
      %s114 = sphi 0, %s114
      %s116 = sphi 0, %s114
      %s117 = sphi 0, %s116
      %s131 = sphi 0, %s117
      %s135 = sphi 0, %s135
      %s137 = sphi 0, %s135
      %s138 = sphi 0, %s137
      %s152 = sphi 0, %s138
      %s156 = sphi 0, %s156
      %s158 = sphi 0, %s156
      %s159 = sphi 0, %s158
      %s173 = sphi 0, %s159
      %s179 = sphi 0, %s181
      %s182 = sphi 0, %s179
      %s183 = sphi 0, %s182
      %s199 = sphi 0, %s183
    $region4: #{tpu_custom_call.1} parent=1 // loop_header_branch
      %20 = sbr.rel (%p18) target = $region8
    $region5: #{tpu_custom_call.1} parent=1 // loop_body
      %s22 = ssub.s32 %s17, 1
      %s23 = ssub.s32 %s17, 2
      %s24 = sadd.s32 %s17, 1
      %s25 = ssub.s32 %s17, %s24
      %p26 = scmp.eq.s32.totalorder %s25, 0
      %s28 = sadd.s32 %s27, 1
      %s29 = scalar_select %p26, %s27, %s28
      %p32 = pneg %p26
      %p33 = scmp.eq.s32.totalorder %s17, 1
      %p34 = por %p32, %p33
      %p35 = scmp.ne.s32.totalorder %s27, %s30
      %p36 = scmp.eq.s32.totalorder %s17, 0
      %p37 = por %p35, %p36
      %p38 = scmp.ne.s32.totalorder %s27, %s30
      %p39 = scmp.eq.s32.totalorder %s22, 1
      %p40 = por %p38, %p39
      %p41 = scmp.ne.s32.totalorder %s30, %s31
      %p42 = scmp.eq.s32.totalorder %s22, 0
      %p43 = por %p41, %p42
      %p44 = scmp.ne.s32.totalorder %s30, %s31
      %p45 = scmp.eq.s32.totalorder %s23, 1
      %p46 = por %p44, %p45
      %p48 = scmp.ne.s32.totalorder %s31, %s47
      %p49 = scmp.eq.s32.totalorder %s23, 0
      %p50 = por %p48, %p49
      %s52 = sadd.s32 %s51, 1
      %p55 = scmp.eq.s32.totalorder %s17, 1
      %p56 = scmp.ne.s32.totalorder %s51, %s53
      %p57 = scmp.eq.s32.totalorder %s17, 0
      %p58 = por %p56, %p57
      %p59 = scmp.ne.s32.totalorder %s51, %s53
      %p60 = scmp.eq.s32.totalorder %s22, 1
      %p61 = por %p59, %p60
      %p62 = scmp.ne.s32.totalorder %s53, %s54
      %p63 = scmp.eq.s32.totalorder %s22, 0
      %p64 = por %p62, %p63
      %p65 = scmp.ne.s32.totalorder %s53, %s54
      %p66 = scmp.eq.s32.totalorder %s23, 1
      %p67 = por %p65, %p66
      %p69 = scmp.ne.s32.totalorder %s54, %s68
      %p70 = scmp.eq.s32.totalorder %s23, 0
      %p71 = por %p69, %p70
      %s73 = sadd.s32 %s72, 1
      %p76 = scmp.eq.s32.totalorder %s17, 1
      %p77 = scmp.ne.s32.totalorder %s72, %s74
      %p78 = scmp.eq.s32.totalorder %s17, 0
      %p79 = por %p77, %p78
      %p80 = scmp.ne.s32.totalorder %s72, %s74
      %p81 = scmp.eq.s32.totalorder %s22, 1
      %p82 = por %p80, %p81
      %p83 = scmp.ne.s32.totalorder %s74, %s75
      %p84 = scmp.eq.s32.totalorder %s22, 0
      %p85 = por %p83, %p84
      %p86 = scmp.ne.s32.totalorder %s74, %s75
      %p87 = scmp.eq.s32.totalorder %s23, 1
      %p88 = por %p86, %p87
      %p90 = scmp.ne.s32.totalorder %s75, %s89
      %p91 = scmp.eq.s32.totalorder %s23, 0
      %p92 = por %p90, %p91
      %s94 = sadd.s32 %s93, 1
      %p97 = scmp.eq.s32.totalorder %s17, 1
      %p98 = scmp.ne.s32.totalorder %s93, %s95
      %p99 = scmp.eq.s32.totalorder %s17, 0
      %p100 = por %p98, %p99
      %p101 = scmp.ne.s32.totalorder %s93, %s95
      %p102 = scmp.eq.s32.totalorder %s22, 1
      %p103 = por %p101, %p102
      %p104 = scmp.ne.s32.totalorder %s95, %s96
      %p105 = scmp.eq.s32.totalorder %s22, 0
      %p106 = por %p104, %p105
      %p107 = scmp.ne.s32.totalorder %s95, %s96
      %p108 = scmp.eq.s32.totalorder %s23, 1
      %p109 = por %p107, %p108
      %p111 = scmp.ne.s32.totalorder %s96, %s110
      %p112 = scmp.eq.s32.totalorder %s23, 0
      %p113 = por %p111, %p112
      %s115 = sadd.s32 %s114, 1
      %p118 = scmp.eq.s32.totalorder %s17, 1
      %p119 = scmp.ne.s32.totalorder %s114, %s116
      %p120 = scmp.eq.s32.totalorder %s17, 0
      %p121 = por %p119, %p120
      %p122 = scmp.ne.s32.totalorder %s114, %s116
      %p123 = scmp.eq.s32.totalorder %s22, 1
      %p124 = por %p122, %p123
      %p125 = scmp.ne.s32.totalorder %s116, %s117
      %p126 = scmp.eq.s32.totalorder %s22, 0
      %p127 = por %p125, %p126
      %p128 = scmp.ne.s32.totalorder %s116, %s117
      %p129 = scmp.eq.s32.totalorder %s23, 1
      %p130 = por %p128, %p129
      %p132 = scmp.ne.s32.totalorder %s117, %s131
      %p133 = scmp.eq.s32.totalorder %s23, 0
      %p134 = por %p132, %p133
      %s136 = sadd.s32 %s135, 1
      %p139 = scmp.eq.s32.totalorder %s17, 1
      %p140 = scmp.ne.s32.totalorder %s135, %s137
      %p141 = scmp.eq.s32.totalorder %s17, 0
      %p142 = por %p140, %p141
      %p143 = scmp.ne.s32.totalorder %s135, %s137
      %p144 = scmp.eq.s32.totalorder %s22, 1
      %p145 = por %p143, %p144
      %p146 = scmp.ne.s32.totalorder %s137, %s138
      %p147 = scmp.eq.s32.totalorder %s22, 0
      %p148 = por %p146, %p147
      %p149 = scmp.ne.s32.totalorder %s137, %s138
      %p150 = scmp.eq.s32.totalorder %s23, 1
      %p151 = por %p149, %p150
      %p153 = scmp.ne.s32.totalorder %s138, %s152
      %p154 = scmp.eq.s32.totalorder %s23, 0
      %p155 = por %p153, %p154
      %s157 = sadd.s32 %s156, 1
      %p160 = scmp.eq.s32.totalorder %s17, 1
      %p161 = scmp.ne.s32.totalorder %s156, %s158
      %p162 = scmp.eq.s32.totalorder %s17, 0
      %p163 = por %p161, %p162
      %p164 = scmp.ne.s32.totalorder %s156, %s158
      %p165 = scmp.eq.s32.totalorder %s22, 1
      %p166 = por %p164, %p165
      %p167 = scmp.ne.s32.totalorder %s158, %s159
      %p168 = scmp.eq.s32.totalorder %s22, 0
      %p169 = por %p167, %p168
      %p170 = scmp.ne.s32.totalorder %s158, %s159
      %p171 = scmp.eq.s32.totalorder %s23, 1
      %p172 = por %p170, %p171
      %p174 = scmp.ne.s32.totalorder %s159, %s173
      %p175 = scmp.eq.s32.totalorder %s23, 0
      %p176 = por %p174, %p175
      %s177 = ssub.s32 %s17, %s24
      %p178 = scmp.eq.s32.totalorder %s177, 0
      %s180 = sadd.s32 %s179, 1
      %s181 = scalar_select %p178, %s179, %s180
      %p184 = pneg %p178
      %p185 = scmp.eq.s32.totalorder %s17, 1
      %p186 = por %p184, %p185
      %p187 = scmp.ne.s32.totalorder %s179, %s182
      %p188 = scmp.eq.s32.totalorder %s17, 0
      %p189 = por %p187, %p188
      %p190 = scmp.ne.s32.totalorder %s179, %s182
      %p191 = scmp.eq.s32.totalorder %s22, 1
      %p192 = por %p190, %p191
      %p193 = scmp.ne.s32.totalorder %s182, %s183
      %p194 = scmp.eq.s32.totalorder %s22, 0
      %p195 = por %p193, %p194
      %p196 = scmp.ne.s32.totalorder %s182, %s183
      %p197 = scmp.eq.s32.totalorder %s23, 1
      %p198 = por %p196, %p197
      %p200 = scmp.ne.s32.totalorder %s183, %s199
      %p201 = scmp.eq.s32.totalorder %s23, 0
      %p202 = por %p200, %p201
      %p203 = scmp.le.s32.totalorder 1, %s17
      %p204 = scmp.lt.s32.totalorder %s17, 3
      %p205 = pnand %p203, %p204
      %p206 = pneg %p205
      // Predicated region
      $region9: #{tpu_custom_call.1} parent=5 // pred_check
        _
      $region10: #{tpu_custom_call.1} parent=5 // pred_check_branch
        %208 = sbr.rel (%p205) target = $region12
      $region11: #{tpu_custom_call.1} parent=5 // pred_region
        %s209 = ssub.s32 %s17, 1
        // Predicated region
        $region13: #{tpu_custom_call.1} parent=11 // pred_check
          %p210 = pneg %p64
        $region14: #{tpu_custom_call.1} parent=11 // pred_check_branch
          %212 = sbr.rel (%p210) target = $region16
        $region15: #{tpu_custom_call.1} parent=11 // pred_region
          _
        $region16: #{tpu_custom_call.1} parent=11 // pred_fallthru
          _
        // Predicated region
        $region17: #{tpu_custom_call.1} parent=11 // pred_check
          %p213 = pneg %p85
        $region18: #{tpu_custom_call.1} parent=11 // pred_check_branch
          %215 = sbr.rel (%p213) target = $region20
        $region19: #{tpu_custom_call.1} parent=11 // pred_region
          _
        $region20: #{tpu_custom_call.1} parent=11 // pred_fallthru
          _
        // Predicated region
        $region21: #{tpu_custom_call.1} parent=11 // pred_check
          %p216 = pneg %p106
        $region22: #{tpu_custom_call.1} parent=11 // pred_check_branch
          %218 = sbr.rel (%p216) target = $region24
        $region23: #{tpu_custom_call.1} parent=11 // pred_region
          _
        $region24: #{tpu_custom_call.1} parent=11 // pred_fallthru
          _
        // Predicated region
        $region25: #{tpu_custom_call.1} parent=11 // pred_check
          %p219 = pneg %p127
        $region26: #{tpu_custom_call.1} parent=11 // pred_check_branch
          %221 = sbr.rel (%p219) target = $region28
        $region27: #{tpu_custom_call.1} parent=11 // pred_region
          _
        $region28: #{tpu_custom_call.1} parent=11 // pred_fallthru
          _
        // Predicated region
        $region29: #{tpu_custom_call.1} parent=11 // pred_check
          %p222 = pneg %p148
        $region30: #{tpu_custom_call.1} parent=11 // pred_check_branch
          %224 = sbr.rel (%p222) target = $region32
        $region31: #{tpu_custom_call.1} parent=11 // pred_region
          %s226 = ssub.s32 4096, 4096
          %227 = vsyncadd [#allocation3], %s226
          %s228 = sshll.u32 [#allocation2], 4
          %s229 = int_to_ptr.vmem [resolvable:$true] %s228
          %234 = dma.hbm_to_vmem [thread:$0]  %s5, 4096, %s229, [#allocation3], 64, 64, 4
        $region32: #{tpu_custom_call.1} parent=11 // pred_fallthru
          _
        // Predicated region
        $region33: #{tpu_custom_call.1} parent=11 // pred_check
          %p235 = pneg %p169
        $region34: #{tpu_custom_call.1} parent=11 // pred_check_branch
          %237 = sbr.rel (%p235) target = $region36
        $region35: #{tpu_custom_call.1} parent=11 // pred_region
          _
        $region36: #{tpu_custom_call.1} parent=11 // pred_fallthru
          _
      $region12: #{tpu_custom_call.1} parent=5 // pred_fallthru
        _
      %p238 = scmp.lt.s32.totalorder %s17, 2
      // Predicated region
      $region37: #{tpu_custom_call.1} parent=5 // pred_check
        %p239 = pneg %p238
      $region38: #{tpu_custom_call.1} parent=5 // pred_check_branch
        %241 = sbr.rel (%p239) target = $region40
      $region39: #{tpu_custom_call.1} parent=5 // pred_region
        // Predicated region
        $region41: #{tpu_custom_call.1} parent=39 // pred_check
          %p242 = pneg %p37
        $region42: #{tpu_custom_call.1} parent=39 // pred_check_branch
          %244 = sbr.rel (%p242) target = $region44
        $region43: #{tpu_custom_call.1} parent=39 // pred_region
          %s245 = smul.u32 32, %s17
          %p246 = scmp.lt.s32.totalorder %s245, 63
          %s247 = scalar_select %p246, %s245, 63
          %s248 = smul.addr %s247, 8
          %s249 = scalar_lea.vmem %s0, %s248
          %s250 = smul.u32 32, %s17
        $region44: #{tpu_custom_call.1} parent=39 // pred_fallthru
          _
      $region40: #{tpu_custom_call.1} parent=5 // pred_fallthru
        _
      %p251 = scmp.le.s32.totalorder 1, %s17
      %p252 = scmp.lt.s32.totalorder %s17, 3
      %p253 = pnand %p251, %p252
      %p254 = pneg %p253
      // Predicated region
      $region45: #{tpu_custom_call.1} parent=5 // pred_check
        _
      $region46: #{tpu_custom_call.1} parent=5 // pred_check_branch
        %256 = sbr.rel (%p253) target = $region48
      $region47: #{tpu_custom_call.1} parent=5 // pred_region
        %s257 = ssub.s32 %s17, 1
        // Predicated region
        $region49: #{tpu_custom_call.1} parent=47 // pred_check
          %p258 = pneg %p148
        $region50: #{tpu_custom_call.1} parent=47 // pred_check_branch
          %260 = sbr.rel (%p258) target = $region52
        $region51: #{tpu_custom_call.1} parent=47 // pred_region
          %261 = dma.done [#allocation3], 4096
        $region52: #{tpu_custom_call.1} parent=47 // pred_fallthru
          _
        %s262 = smul.u32 32, %s22
        %p263 = scmp.lt.s32.totalorder %s262, 63
        %s264 = scalar_select %p263, %s262, 63
        %s265 = smul.addr %s264, 8
        %s266 = scalar_lea.vmem %s0, %s265
        %p267 = pneg %p43
        %p268 = pneg %p40
        %p269 = pneg %p64
        %p270 = pneg %p61
        %p271 = pneg %p85
        %p272 = pneg %p82
        %p273 = pneg %p106
        %p274 = pneg %p103
        %p275 = pneg %p127
        %p276 = pneg %p124
        %p277 = pneg %p148
        %p278 = pneg %p145
        %p279 = pneg %p169
        %p280 = pneg %p166
        %p281 = pneg %p195
        %p282 = pneg %p192
        %s283 = sand.u32 %s182, 1
        %s284 = scalar_lea.sflag [#allocation4], %s283
        %s285 = sand.u32 %s182, 1
        %s286 = smul.addr %s285, 128
        %s287 = scalar_lea.vmem [#allocation5], %s286
        %s288 = smul.u32 32, %s22
        %p289 = scmp.lt.s32.totalorder %s288, 63
        %s290 = scalar_select %p289, %s288, 63
        %s291 = smul.addr %s290, 8
        %s292 = scalar_lea.vmem %s0, %s291
        %s293 = smul.u32 32, %s22
        %s294 = smul.u32 32, %s22
        %v296 = vld [vmem:[%s292] sm:$0xff]
        %v297 = vld [vmem:[%s292 + $0x8] sm:$0xff]
        %v298 = vld [vmem:[%s292 + $0x10] sm:$0xff]
        %v299 = vld [vmem:[%s292 + $0x18] sm:$0xff]
        %v300 = vld [vmem:[%s292 + $0x20] sm:$0xff]
        %v301 = vld [vmem:[%s292 + $0x28] sm:$0xff]
        %v302 = vld [vmem:[%s292 + $0x30] sm:$0xff]
        %v303 = vld [vmem:[%s292 + $0x38] sm:$0xff]
        %v304 = vld [vmem:[%s292 + $0x40] sm:$0xff]
        %v305 = vld [vmem:[%s292 + $0x48] sm:$0xff]
        %v306 = vld [vmem:[%s292 + $0x50] sm:$0xff]
        %v307 = vld [vmem:[%s292 + $0x58] sm:$0xff]
        %v308 = vld [vmem:[%s292 + $0x60] sm:$0xff]
        %v309 = vld [vmem:[%s292 + $0x68] sm:$0xff]
        %v310 = vld [vmem:[%s292 + $0x70] sm:$0xff]
        %v311 = vld [vmem:[%s292 + $0x78] sm:$0xff]
        %v312 = vld [vmem:[%s292 + $0x80] sm:$0xff]
        %v313 = vld [vmem:[%s292 + $0x88] sm:$0xff]
        %v314 = vld [vmem:[%s292 + $0x90] sm:$0xff]
        %v315 = vld [vmem:[%s292 + $0x98] sm:$0xff]
        %v316 = vld [vmem:[%s292 + $0xa0] sm:$0xff]
        %v317 = vld [vmem:[%s292 + $0xa8] sm:$0xff]
        %v318 = vld [vmem:[%s292 + $0xb0] sm:$0xff]
        %v319 = vld [vmem:[%s292 + $0xb8] sm:$0xff]
        %v320 = vld [vmem:[%s292 + $0xc0] sm:$0xff]
        %v321 = vld [vmem:[%s292 + $0xc8] sm:$0xff]
        %v322 = vld [vmem:[%s292 + $0xd0] sm:$0xff]
        %v323 = vld [vmem:[%s292 + $0xd8] sm:$0xff]
        %v324 = vld [vmem:[%s292 + $0xe0] sm:$0xff]
        %v325 = vld [vmem:[%s292 + $0xe8] sm:$0xff]
        %v326 = vld [vmem:[%s292 + $0xf0] sm:$0xff]
        %v327 = vld [vmem:[%s292 + $0xf8] sm:$0xff]
        %v328 = vpack.c.bf16 %v297, %v296
        %v329 = vpack.c.bf16 %v299, %v298
        %v330 = vpack.c.bf16 %v301, %v300
        %v331 = vpack.c.bf16 %v303, %v302
        %v332 = vpack.c.bf16 %v305, %v304
        %v333 = vpack.c.bf16 %v307, %v306
        %v334 = vpack.c.bf16 %v309, %v308
        %v335 = vpack.c.bf16 %v311, %v310
        %v336 = vpack.c.bf16 %v313, %v312
        %v337 = vpack.c.bf16 %v315, %v314
        %v338 = vpack.c.bf16 %v317, %v316
        %v339 = vpack.c.bf16 %v319, %v318
        %v340 = vpack.c.bf16 %v321, %v320
        %v341 = vpack.c.bf16 %v323, %v322
        %v342 = vpack.c.bf16 %v325, %v324
        %v343 = vpack.c.bf16 %v327, %v326
        %v344 = vld [vmem:[%s1] sm:$0xff]
        %v345 = vld [vmem:[%s1 + $0x8] sm:$0xff]
        %v346 = vld [vmem:[%s1 + $0x10] sm:$0xff]
        %v347 = vld [vmem:[%s1 + $0x18] sm:$0x77]
        %v348 = vld [vmem:[%s2] sm:$0x3]
        %v350 = vlaneseq
        %v351 = vshrl.u32 %v350, 7
        %v352 = vsub.s32 0, %v351
        %v353 = vrot.slane %v348, %v352
        %v354 = vlaneseq
        %v355 = vshrl.u32 %v354, 7
        %v356 = vsub.s32 1, %v355
        %v357 = vrot.slane %v348, %v356
        %v364 = vunpack.c.l.b16 %v344
        %v365 = vunpack.c.h.b16 %v344
        %v366 = vunpack.c.l.b16 %v345
        %v367 = vunpack.c.h.b16 %v345
        %v368 = vunpack.c.l.b16 %v346
        %v369 = vunpack.c.h.b16 %v346
        %v370 = vunpack.c.l.b16 %v347
        %v371 = vunpack.c.h.b16 %v347
        %v372 = vpack.c.b16 %v366, %v364
        %v373 = vpack.c.b16 %v367, %v365
        %v374 = vpack.c.b16 %v370, %v368
        %v375 = vpack.c.b16 %v371, %v369
        %vm378 = vcmask 244736
        %v380 = vsel %vm378, %v328, 0
        %v383 = vsel %vm378, %v329, 0
        %v386 = vsel %vm378, %v330, 0
        %v389 = vsel %vm378, %v331, 0
        %v392 = vsel %vm378, %v332, 0
        %v395 = vsel %vm378, %v333, 0
        %v398 = vsel %vm378, %v334, 0
        %v401 = vsel %vm378, %v335, 0
        %v404 = vsel %vm378, %v336, 0
        %v407 = vsel %vm378, %v337, 0
        %v410 = vsel %vm378, %v338, 0
        %v413 = vsel %vm378, %v339, 0
        %v416 = vsel %vm378, %v340, 0
        %v419 = vsel %vm378, %v341, 0
        %v422 = vsel %vm378, %v342, 0
        %v425 = vsel %vm378, %v343, 0
        %vm427 = vcmask 1046528
        %v429 = vsel %vm427, %v374, 0
        %v432 = vsel %vm427, %v375, 0
        %434 = vmatprep.subr.bf16.mxu0 %v373
        %435 = vmatpush1.bf16.msra.mxu0 %v372
        %436 = vmatprep.subr.bf16.mxu0 %v432
        %437 = vmatpush1.bf16.msra.mxu0 %v429
        %438 = vmatprep.subr.bf16.mxu0 0
        %439 = vmatpush1.bf16.msra.mxu0 0
        %440 = vmatprep.subr.bf16.mxu0 0
        %441 = vmatpush1.bf16.msra.mxu0 0
        %442 = vmatprep.subr.bf16.mxu0 0
        %443 = vmatpush1.bf16.msra.mxu0 0
        %444 = vmatprep.subr.bf16.mxu0 0
        %445 = vmatpush1.bf16.msra.mxu0 0
        %446 = vmatprep.subr.bf16.mxu0 0
        %447 = vmatpush1.bf16.msra.mxu0 0
        %448 = vmatprep.subr.bf16.mxu0 0
        %449 = vmatpush1.bf16.msra.mxu0 0
        %450 = vmatprep.subr.bf16.mxu0 0
        %451 = vmatpush1.bf16.msra.mxu0 0
        %452 = vmatprep.subr.bf16.mxu0 0
        %453 = vmatpush1.bf16.msra.mxu0 0
        %454 = vmatprep.subr.bf16.mxu0 0
        %455 = vmatpush1.bf16.msra.mxu0 0
        %456 = vmatprep.subr.bf16.mxu0 0
        %457 = vmatpush1.bf16.msra.mxu0 0
        %458 = vmatprep.subr.bf16.mxu0 0
        %459 = vmatpush1.bf16.msra.mxu0 0
        %460 = vmatprep.subr.bf16.mxu0 0
        %461 = vmatpush1.bf16.msra.mxu0 0
        %462 = vmatprep.subr.bf16.mxu0 0
        %463 = vmatpush1.bf16.msra.mxu0 0
        %464 = vmatprep.subr.bf16.mxu0 0
        %465 = vmatpush1.bf16.msra.mxu0 0
        %466 = vmatprep.mubr.bf16.mxu0 0
        %467 = vmatmul.mubr.bf16.gmra.mrb[0].mxu0 %v380
        %v468 = vpop.f32.mrb[0].mxu0
        %v469 = vadd.f32 %v353, %v468
        %v470 = vpop.f32.mrb[0].mxu0
        %v471 = vadd.f32 %v357, %v470
        %v472 = vpop.f32.mrb[0].mxu0
        %v473 = vadd.f32 %v353, %v472
        %v474 = vpop.f32.mrb[0].mxu0
        %v475 = vadd.f32 %v357, %v474
        %476 = vmatprep.mubr.bf16.mxu0 0
        %477 = vmatmul.mubr.bf16.gmra.mrb[0].mxu0 %v383
        %v478 = vpop.f32.mrb[0].mxu0
        %v479 = vadd.f32 %v353, %v478
        %v480 = vpop.f32.mrb[0].mxu0
        %v481 = vadd.f32 %v357, %v480
        %v482 = vpop.f32.mrb[0].mxu0
        %v483 = vadd.f32 %v353, %v482
        %v484 = vpop.f32.mrb[0].mxu0
        %v485 = vadd.f32 %v357, %v484
        %486 = vmatprep.mubr.bf16.mxu0 0
        %487 = vmatmul.mubr.bf16.gmra.mrb[0].mxu0 %v386
        %v488 = vpop.f32.mrb[0].mxu0
        %v489 = vadd.f32 %v353, %v488
        %v490 = vpop.f32.mrb[0].mxu0
        %v491 = vadd.f32 %v357, %v490
        %v492 = vpop.f32.mrb[0].mxu0
        %v493 = vadd.f32 %v353, %v492
        %v494 = vpop.f32.mrb[0].mxu0
        %v495 = vadd.f32 %v357, %v494
        %496 = vmatprep.mubr.bf16.mxu0 0
        %497 = vmatmul.mubr.bf16.gmra.mrb[0].mxu0 %v389
        %v498 = vpop.f32.mrb[0].mxu0
        %v499 = vadd.f32 %v353, %v498
        %v500 = vpop.f32.mrb[0].mxu0
        %v501 = vadd.f32 %v357, %v500
        %v502 = vpop.f32.mrb[0].mxu0
        %v503 = vadd.f32 %v353, %v502
        %v504 = vpop.f32.mrb[0].mxu0
        %v505 = vadd.f32 %v357, %v504
        %506 = vmatprep.mubr.bf16.mxu0 0
        %507 = vmatmul.mubr.bf16.gmra.mrb[0].mxu0 %v392
        %v508 = vpop.f32.mrb[0].mxu0
        %v509 = vadd.f32 %v353, %v508
        %v510 = vpop.f32.mrb[0].mxu0
        %v511 = vadd.f32 %v357, %v510
        %v512 = vpop.f32.mrb[0].mxu0
        %v513 = vadd.f32 %v353, %v512
        %v514 = vpop.f32.mrb[0].mxu0
        %v515 = vadd.f32 %v357, %v514
        %516 = vmatprep.mubr.bf16.mxu0 0
        %517 = vmatmul.mubr.bf16.gmra.mrb[0].mxu0 %v395
        %v518 = vpop.f32.mrb[0].mxu0
        %v519 = vadd.f32 %v353, %v518
        %v520 = vpop.f32.mrb[0].mxu0
        %v521 = vadd.f32 %v357, %v520
        %v522 = vpop.f32.mrb[0].mxu0
        %v523 = vadd.f32 %v353, %v522
        %v524 = vpop.f32.mrb[0].mxu0
        %v525 = vadd.f32 %v357, %v524
        %526 = vmatprep.mubr.bf16.mxu0 0
        %527 = vmatmul.mubr.bf16.gmra.mrb[0].mxu0 %v398
        %v528 = vpop.f32.mrb[0].mxu0
        %v529 = vadd.f32 %v353, %v528
        %v530 = vpop.f32.mrb[0].mxu0
        %v531 = vadd.f32 %v357, %v530
        %v532 = vpop.f32.mrb[0].mxu0
        %v533 = vadd.f32 %v353, %v532
        %v534 = vpop.f32.mrb[0].mxu0
        %v535 = vadd.f32 %v357, %v534
        %536 = vmatprep.mubr.bf16.mxu0 0
        %537 = vmatmul.mubr.bf16.gmra.mrb[0].mxu0 %v401
        %v538 = vpop.f32.mrb[0].mxu0
        %v539 = vadd.f32 %v353, %v538
        %v540 = vpop.f32.mrb[0].mxu0
        %v541 = vadd.f32 %v357, %v540
        %v542 = vpop.f32.mrb[0].mxu0
        %v543 = vadd.f32 %v353, %v542
        %v544 = vpop.f32.mrb[0].mxu0
        %v545 = vadd.f32 %v357, %v544
        %546 = vmatprep.mubr.bf16.mxu0 0
        %547 = vmatmul.mubr.bf16.gmra.mrb[0].mxu0 %v404
        %v548 = vpop.f32.mrb[0].mxu0
        %v549 = vadd.f32 %v353, %v548
        %v550 = vpop.f32.mrb[0].mxu0
        %v551 = vadd.f32 %v357, %v550
        %v552 = vpop.f32.mrb[0].mxu0
        %v553 = vadd.f32 %v353, %v552
        %v554 = vpop.f32.mrb[0].mxu0
        %v555 = vadd.f32 %v357, %v554
        %556 = vmatprep.mubr.bf16.mxu0 0
        %557 = vmatmul.mubr.bf16.gmra.mrb[0].mxu0 %v407
        %v558 = vpop.f32.mrb[0].mxu0
        %v559 = vadd.f32 %v353, %v558
        %v560 = vpop.f32.mrb[0].mxu0
        %v561 = vadd.f32 %v357, %v560
        %v562 = vpop.f32.mrb[0].mxu0
        %v563 = vadd.f32 %v353, %v562
        %v564 = vpop.f32.mrb[0].mxu0
        %v565 = vadd.f32 %v357, %v564
        %566 = vmatprep.mubr.bf16.mxu0 0
        %567 = vmatmul.mubr.bf16.gmra.mrb[0].mxu0 %v410
        %v568 = vpop.f32.mrb[0].mxu0
        %v569 = vadd.f32 %v353, %v568
        %v570 = vpop.f32.mrb[0].mxu0
        %v571 = vadd.f32 %v357, %v570
        %v572 = vpop.f32.mrb[0].mxu0
        %v573 = vadd.f32 %v353, %v572
        %v574 = vpop.f32.mrb[0].mxu0
        %v575 = vadd.f32 %v357, %v574
        %576 = vmatprep.mubr.bf16.mxu0 0
        %577 = vmatmul.mubr.bf16.gmra.mrb[0].mxu0 %v413
        %v578 = vpop.f32.mrb[0].mxu0
        %v579 = vadd.f32 %v353, %v578
        %v580 = vpop.f32.mrb[0].mxu0
        %v581 = vadd.f32 %v357, %v580
        %v582 = vpop.f32.mrb[0].mxu0
        %v583 = vadd.f32 %v353, %v582
        %v584 = vpop.f32.mrb[0].mxu0
        %v585 = vadd.f32 %v357, %v584
        %586 = vmatprep.mubr.bf16.mxu0 0
        %587 = vmatmul.mubr.bf16.gmra.mrb[0].mxu0 %v416
        %v588 = vpop.f32.mrb[0].mxu0
        %v589 = vadd.f32 %v353, %v588
        %v590 = vpop.f32.mrb[0].mxu0
        %v591 = vadd.f32 %v357, %v590
        %v592 = vpop.f32.mrb[0].mxu0
        %v593 = vadd.f32 %v353, %v592
        %v594 = vpop.f32.mrb[0].mxu0
        %v595 = vadd.f32 %v357, %v594
        %596 = vmatprep.mubr.bf16.mxu0 0
        %597 = vmatmul.mubr.bf16.gmra.mrb[0].mxu0 %v419
        %v598 = vpop.f32.mrb[0].mxu0
        %v599 = vadd.f32 %v353, %v598
        %v600 = vpop.f32.mrb[0].mxu0
        %v601 = vadd.f32 %v357, %v600
        %v602 = vpop.f32.mrb[0].mxu0
        %v603 = vadd.f32 %v353, %v602
        %v604 = vpop.f32.mrb[0].mxu0
        %v605 = vadd.f32 %v357, %v604
        %606 = vmatprep.mubr.bf16.mxu0 0
        %607 = vmatmul.mubr.bf16.gmra.mrb[0].mxu0 %v422
        %v608 = vpop.f32.mrb[0].mxu0
        %v609 = vadd.f32 %v353, %v608
        %v610 = vpop.f32.mrb[0].mxu0
        %v611 = vadd.f32 %v357, %v610
        %v612 = vpop.f32.mrb[0].mxu0
        %v613 = vadd.f32 %v353, %v612
        %v614 = vpop.f32.mrb[0].mxu0
        %v615 = vadd.f32 %v357, %v614
        %616 = vmatprep.mubr.bf16.mxu0 0
        %617 = vmatmul.mubr.bf16.gmra.mrb[0].mxu0 %v425
        %v618 = vpop.f32.mrb[0].mxu0
        %v619 = vadd.f32 %v353, %v618
        %v620 = vpop.f32.mrb[0].mxu0
        %v621 = vadd.f32 %v357, %v620
        %v622 = vpop.f32.mrb[0].mxu0
        %v623 = vadd.f32 %v353, %v622
        %v624 = vpop.f32.mrb[0].mxu0
        %v625 = vadd.f32 %v357, %v624
        %626 = vdwg.mxu0
        %v627 = vmax.f32 %v469, 0.0
        %v628 = vmax.f32 %v471, 0.0
        %v629 = vmax.f32 %v473, 0.0
        %v630 = vmax.f32 %v475, 0.0
        %v631 = vmax.f32 %v479, 0.0
        %v632 = vmax.f32 %v481, 0.0
        %v633 = vmax.f32 %v483, 0.0
        %v634 = vmax.f32 %v485, 0.0
        %v635 = vmax.f32 %v489, 0.0
        %v636 = vmax.f32 %v491, 0.0
        %v637 = vmax.f32 %v493, 0.0
        %v638 = vmax.f32 %v495, 0.0
        %v639 = vmax.f32 %v499, 0.0
        %v640 = vmax.f32 %v501, 0.0
        %v641 = vmax.f32 %v503, 0.0
        %v642 = vmax.f32 %v505, 0.0
        %v643 = vmax.f32 %v509, 0.0
        %v644 = vmax.f32 %v511, 0.0
        %v645 = vmax.f32 %v513, 0.0
        %v646 = vmax.f32 %v515, 0.0
        %v647 = vmax.f32 %v519, 0.0
        %v648 = vmax.f32 %v521, 0.0
        %v649 = vmax.f32 %v523, 0.0
        %v650 = vmax.f32 %v525, 0.0
        %v651 = vmax.f32 %v529, 0.0
        %v652 = vmax.f32 %v531, 0.0
        %v653 = vmax.f32 %v533, 0.0
        %v654 = vmax.f32 %v535, 0.0
        %v655 = vmax.f32 %v539, 0.0
        %v656 = vmax.f32 %v541, 0.0
        %v657 = vmax.f32 %v543, 0.0
        %v658 = vmax.f32 %v545, 0.0
        %v659 = vmax.f32 %v549, 0.0
        %v660 = vmax.f32 %v551, 0.0
        %v661 = vmax.f32 %v553, 0.0
        %v662 = vmax.f32 %v555, 0.0
        %v663 = vmax.f32 %v559, 0.0
        %v664 = vmax.f32 %v561, 0.0
        %v665 = vmax.f32 %v563, 0.0
        %v666 = vmax.f32 %v565, 0.0
        %v667 = vmax.f32 %v569, 0.0
        %v668 = vmax.f32 %v571, 0.0
        %v669 = vmax.f32 %v573, 0.0
        %v670 = vmax.f32 %v575, 0.0
        %v671 = vmax.f32 %v579, 0.0
        %v672 = vmax.f32 %v581, 0.0
        %v673 = vmax.f32 %v583, 0.0
        %v674 = vmax.f32 %v585, 0.0
        %v675 = vmax.f32 %v589, 0.0
        %v676 = vmax.f32 %v591, 0.0
        %v677 = vmax.f32 %v593, 0.0
        %v678 = vmax.f32 %v595, 0.0
        %v679 = vmax.f32 %v599, 0.0
        %v680 = vmax.f32 %v601, 0.0
        %v681 = vmax.f32 %v603, 0.0
        %v682 = vmax.f32 %v605, 0.0
        %v683 = vmax.f32 %v609, 0.0
        %v684 = vmax.f32 %v611, 0.0
        %v685 = vmax.f32 %v613, 0.0
        %v686 = vmax.f32 %v615, 0.0
        %v687 = vmax.f32 %v619, 0.0
        %v688 = vmax.f32 %v621, 0.0
        %v689 = vmax.f32 %v623, 0.0
        %v690 = vmax.f32 %v625, 0.0
        %v691 = vpack.c.bf16 %v629, %v627
        %v692 = vpack.c.bf16 %v630, %v628
        %v693 = vpack.c.bf16 %v633, %v631
        %v694 = vpack.c.bf16 %v634, %v632
        %v695 = vpack.c.bf16 %v637, %v635
        %v696 = vpack.c.bf16 %v638, %v636
        %v697 = vpack.c.bf16 %v641, %v639
        %v698 = vpack.c.bf16 %v642, %v640
        %v699 = vpack.c.bf16 %v645, %v643
        %v700 = vpack.c.bf16 %v646, %v644
        %v701 = vpack.c.bf16 %v649, %v647
        %v702 = vpack.c.bf16 %v650, %v648
        %v703 = vpack.c.bf16 %v653, %v651
        %v704 = vpack.c.bf16 %v654, %v652
        %v705 = vpack.c.bf16 %v657, %v655
        %v706 = vpack.c.bf16 %v658, %v656
        %v707 = vpack.c.bf16 %v661, %v659
        %v708 = vpack.c.bf16 %v662, %v660
        %v709 = vpack.c.bf16 %v665, %v663
        %v710 = vpack.c.bf16 %v666, %v664
        %v711 = vpack.c.bf16 %v669, %v667
        %v712 = vpack.c.bf16 %v670, %v668
        %v713 = vpack.c.bf16 %v673, %v671
        %v714 = vpack.c.bf16 %v674, %v672
        %v715 = vpack.c.bf16 %v677, %v675
        %v716 = vpack.c.bf16 %v678, %v676
        %v717 = vpack.c.bf16 %v681, %v679
        %v718 = vpack.c.bf16 %v682, %v680
        %v719 = vpack.c.bf16 %v685, %v683
        %v720 = vpack.c.bf16 %v686, %v684
        %v721 = vpack.c.bf16 %v689, %v687
        %v722 = vpack.c.bf16 %v690, %v688
        %v723 = vld [vmem:[%s3] sm:$0xff]
        %v724 = vld [vmem:[%s3 + $0x8] sm:$0xff]
        %v725 = vld [vmem:[%s3 + $0x10] sm:$0xff]
        %v726 = vld [vmem:[%s3 + $0x18] sm:$0xff]
        %v727 = vld [vmem:[%s3 + $0x20] sm:$0xff]
        %v728 = vld [vmem:[%s3 + $0x28] sm:$0xff]
        %v729 = vld [vmem:[%s3 + $0x30] sm:$0xff]
        %v730 = vld [vmem:[%s3 + $0x38] sm:$0xff]
        %v731 = vld [vmem:[%s3 + $0x40] sm:$0xff]
        %v732 = vld [vmem:[%s3 + $0x48] sm:$0xff]
        %v733 = vld [vmem:[%s3 + $0x50] sm:$0xff]
        %v734 = vld [vmem:[%s3 + $0x58] sm:$0xff]
        %v735 = vld [vmem:[%s3 + $0x60] sm:$0xff]
        %v736 = vld [vmem:[%s3 + $0x68] sm:$0xff]
        %v737 = vld [vmem:[%s3 + $0x70] sm:$0xff]
        %v738 = vld [vmem:[%s3 + $0x78] sm:$0xff]
        %v739 = vld [vmem:[%s3 + $0x80] sm:$0xff]
        %v740 = vld [vmem:[%s3 + $0x88] sm:$0xff]
        %v741 = vld [vmem:[%s3 + $0x90] sm:$0xff]
        %v742 = vld [vmem:[%s3 + $0x98] sm:$0xff]
        %v743 = vld [vmem:[%s3 + $0xa0] sm:$0xff]
        %v744 = vld [vmem:[%s3 + $0xa8] sm:$0xff]
        %v745 = vld [vmem:[%s3 + $0xb0] sm:$0xff]
        %v746 = vld [vmem:[%s3 + $0xb8] sm:$0xff]
        %v747 = vld [vmem:[%s3 + $0xc0] sm:$0xff]
        %v748 = vld [vmem:[%s3 + $0xc8] sm:$0xff]
        %v749 = vld [vmem:[%s3 + $0xd0] sm:$0xff]
        %v750 = vld [vmem:[%s3 + $0xd8] sm:$0xff]
        %v751 = vld [vmem:[%s3 + $0xe0] sm:$0xff]
        %v752 = vld [vmem:[%s3 + $0xe8] sm:$0xff]
        %v753 = vld [vmem:[%s3 + $0xf0] sm:$0xff]
        %v754 = vld [vmem:[%s3 + $0xf8] sm:$0xff]
        %v755 = vld [vmem:[%s3 + $0x100] sm:$0xff]
        %v756 = vld [vmem:[%s3 + $0x108] sm:$0xff]
        %v757 = vld [vmem:[%s3 + $0x110] sm:$0xff]
        %v758 = vld [vmem:[%s3 + $0x118] sm:$0xff]
        %v759 = vld [vmem:[%s3 + $0x120] sm:$0xff]
        %v760 = vld [vmem:[%s3 + $0x128] sm:$0xff]
        %v761 = vld [vmem:[%s3 + $0x130] sm:$0xff]
        %v762 = vld [vmem:[%s3 + $0x138] sm:$0xff]
        %v763 = vld [vmem:[%s3 + $0x140] sm:$0xff]
        %v764 = vld [vmem:[%s3 + $0x148] sm:$0xff]
        %v765 = vld [vmem:[%s3 + $0x150] sm:$0xff]
        %v766 = vld [vmem:[%s3 + $0x158] sm:$0xff]
        %v767 = vld [vmem:[%s3 + $0x160] sm:$0xff]
        %v768 = vld [vmem:[%s3 + $0x168] sm:$0xff]
        %v769 = vld [vmem:[%s3 + $0x170] sm:$0xff]
        %v770 = vld [vmem:[%s3 + $0x178] sm:$0xff]
        %v771 = vld [vmem:[%s3 + $0x180] sm:$0xff]
        %v772 = vld [vmem:[%s3 + $0x188] sm:$0xff]
        %v773 = vld [vmem:[%s3 + $0x190] sm:$0xff]
        %v774 = vld [vmem:[%s3 + $0x198] sm:$0xff]
        %v775 = vld [vmem:[%s3 + $0x1a0] sm:$0xff]
        %v776 = vld [vmem:[%s3 + $0x1a8] sm:$0xff]
        %v777 = vld [vmem:[%s3 + $0x1b0] sm:$0xff]
        %v778 = vld [vmem:[%s3 + $0x1b8] sm:$0xff]
        %v779 = vld [vmem:[%s3 + $0x1c0] sm:$0xff]
        %v780 = vld [vmem:[%s3 + $0x1c8] sm:$0xff]
        %v781 = vld [vmem:[%s3 + $0x1d0] sm:$0xff]
        %v782 = vld [vmem:[%s3 + $0x1d8] sm:$0xff]
        %v783 = vld [vmem:[%s3 + $0x1e0] sm:$0xff]
        %v784 = vld [vmem:[%s3 + $0x1e8] sm:$0xff]
        %v785 = vld [vmem:[%s3 + $0x1f0] sm:$0xff]
        %v786 = vld [vmem:[%s3 + $0x1f8] sm:$0xff]
        %v787 = vld [vmem:[%s4] sm:$0xf]
        %v789 = vlaneseq
        %v790 = vshrl.u32 %v789, 7
        %v791 = vsub.s32 0, %v790
        %v792 = vrot.slane %v787, %v791
        %v793 = vlaneseq
        %v794 = vshrl.u32 %v793, 7
        %v795 = vsub.s32 1, %v794
        %v796 = vrot.slane %v787, %v795
        %v797 = vlaneseq
        %v798 = vshrl.u32 %v797, 7
        %v799 = vsub.s32 2, %v798
        %v800 = vrot.slane %v787, %v799
        %v801 = vlaneseq
        %v802 = vshrl.u32 %v801, 7
        %v803 = vsub.s32 3, %v802
        %v804 = vrot.slane %v787, %v803
        %v873 = vunpack.c.l.b16 %v723
        %v874 = vunpack.c.h.b16 %v723
        %v875 = vunpack.c.l.b16 %v724
        %v876 = vunpack.c.h.b16 %v724
        %v877 = vunpack.c.l.b16 %v725
        %v878 = vunpack.c.h.b16 %v725
        %v879 = vunpack.c.l.b16 %v726
        %v880 = vunpack.c.h.b16 %v726
        %v881 = vunpack.c.l.b16 %v727
        %v882 = vunpack.c.h.b16 %v727
        %v883 = vunpack.c.l.b16 %v728
        %v884 = vunpack.c.h.b16 %v728
        %v885 = vunpack.c.l.b16 %v729
        %v886 = vunpack.c.h.b16 %v729
        %v887 = vunpack.c.l.b16 %v730
        %v888 = vunpack.c.h.b16 %v730
        %v889 = vunpack.c.l.b16 %v731
        %v890 = vunpack.c.h.b16 %v731
        %v891 = vunpack.c.l.b16 %v732
        %v892 = vunpack.c.h.b16 %v732
        %v893 = vunpack.c.l.b16 %v733
        %v894 = vunpack.c.h.b16 %v733
        %v895 = vunpack.c.l.b16 %v734
        %v896 = vunpack.c.h.b16 %v734
        %v897 = vunpack.c.l.b16 %v735
        %v898 = vunpack.c.h.b16 %v735
        %v899 = vunpack.c.l.b16 %v736
        %v900 = vunpack.c.h.b16 %v736
        %v901 = vunpack.c.l.b16 %v737
        %v902 = vunpack.c.h.b16 %v737
        %v903 = vunpack.c.l.b16 %v738
        %v904 = vunpack.c.h.b16 %v738
        %v905 = vunpack.c.l.b16 %v739
        %v906 = vunpack.c.h.b16 %v739
        %v907 = vunpack.c.l.b16 %v740
        %v908 = vunpack.c.h.b16 %v740
        %v909 = vunpack.c.l.b16 %v741
        %v910 = vunpack.c.h.b16 %v741
        %v911 = vunpack.c.l.b16 %v742
        %v912 = vunpack.c.h.b16 %v742
        %v913 = vunpack.c.l.b16 %v743
        %v914 = vunpack.c.h.b16 %v743
        %v915 = vunpack.c.l.b16 %v744
        %v916 = vunpack.c.h.b16 %v744
        %v917 = vunpack.c.l.b16 %v745
        %v918 = vunpack.c.h.b16 %v745
        %v919 = vunpack.c.l.b16 %v746
        %v920 = vunpack.c.h.b16 %v746
        %v921 = vunpack.c.l.b16 %v747
        %v922 = vunpack.c.h.b16 %v747
        %v923 = vunpack.c.l.b16 %v748
        %v924 = vunpack.c.h.b16 %v748
        %v925 = vunpack.c.l.b16 %v749
        %v926 = vunpack.c.h.b16 %v749
        %v927 = vunpack.c.l.b16 %v750
        %v928 = vunpack.c.h.b16 %v750
        %v929 = vunpack.c.l.b16 %v751
        %v930 = vunpack.c.h.b16 %v751
        %v931 = vunpack.c.l.b16 %v752
        %v932 = vunpack.c.h.b16 %v752
        %v933 = vunpack.c.l.b16 %v753
        %v934 = vunpack.c.h.b16 %v753
        %v935 = vunpack.c.l.b16 %v754
        %v936 = vunpack.c.h.b16 %v754
        %v937 = vunpack.c.l.b16 %v755
        %v938 = vunpack.c.h.b16 %v755
        %v939 = vunpack.c.l.b16 %v756
        %v940 = vunpack.c.h.b16 %v756
        %v941 = vunpack.c.l.b16 %v757
        %v942 = vunpack.c.h.b16 %v757
        %v943 = vunpack.c.l.b16 %v758
        %v944 = vunpack.c.h.b16 %v758
        %v945 = vunpack.c.l.b16 %v759
        %v946 = vunpack.c.h.b16 %v759
        %v947 = vunpack.c.l.b16 %v760
        %v948 = vunpack.c.h.b16 %v760
        %v949 = vunpack.c.l.b16 %v761
        %v950 = vunpack.c.h.b16 %v761
        %v951 = vunpack.c.l.b16 %v762
        %v952 = vunpack.c.h.b16 %v762
        %v953 = vunpack.c.l.b16 %v763
        %v954 = vunpack.c.h.b16 %v763
        %v955 = vunpack.c.l.b16 %v764
        %v956 = vunpack.c.h.b16 %v764
        %v957 = vunpack.c.l.b16 %v765
        %v958 = vunpack.c.h.b16 %v765
        %v959 = vunpack.c.l.b16 %v766
        %v960 = vunpack.c.h.b16 %v766
        %v961 = vunpack.c.l.b16 %v767
        %v962 = vunpack.c.h.b16 %v767
        %v963 = vunpack.c.l.b16 %v768
        %v964 = vunpack.c.h.b16 %v768
        %v965 = vunpack.c.l.b16 %v769
        %v966 = vunpack.c.h.b16 %v769
        %v967 = vunpack.c.l.b16 %v770
        %v968 = vunpack.c.h.b16 %v770
        %v969 = vunpack.c.l.b16 %v771
        %v970 = vunpack.c.h.b16 %v771
        %v971 = vunpack.c.l.b16 %v772
        %v972 = vunpack.c.h.b16 %v772
        %v973 = vunpack.c.l.b16 %v773
        %v974 = vunpack.c.h.b16 %v773
        %v975 = vunpack.c.l.b16 %v774
        %v976 = vunpack.c.h.b16 %v774
        %v977 = vunpack.c.l.b16 %v775
        %v978 = vunpack.c.h.b16 %v775
        %v979 = vunpack.c.l.b16 %v776
        %v980 = vunpack.c.h.b16 %v776
        %v981 = vunpack.c.l.b16 %v777
        %v982 = vunpack.c.h.b16 %v777
        %v983 = vunpack.c.l.b16 %v778
        %v984 = vunpack.c.h.b16 %v778
        %v985 = vunpack.c.l.b16 %v779
        %v986 = vunpack.c.h.b16 %v779
        %v987 = vunpack.c.l.b16 %v780
        %v988 = vunpack.c.h.b16 %v780
        %v989 = vunpack.c.l.b16 %v781
        %v990 = vunpack.c.h.b16 %v781
        %v991 = vunpack.c.l.b16 %v782
        %v992 = vunpack.c.h.b16 %v782
        %v993 = vunpack.c.l.b16 %v783
        %v994 = vunpack.c.h.b16 %v783
        %v995 = vunpack.c.l.b16 %v784
        %v996 = vunpack.c.h.b16 %v784
        %v997 = vunpack.c.l.b16 %v785
        %v998 = vunpack.c.h.b16 %v785
        %v999 = vunpack.c.l.b16 %v786
        %v1000 = vunpack.c.h.b16 %v786
        %v1001 = vpack.c.b16 %v877, %v873
        %v1002 = vpack.c.b16 %v878, %v874
        %v1003 = vpack.c.b16 %v879, %v875
        %v1004 = vpack.c.b16 %v880, %v876
        %v1005 = vpack.c.b16 %v885, %v881
        %v1006 = vpack.c.b16 %v886, %v882
        %v1007 = vpack.c.b16 %v887, %v883
        %v1008 = vpack.c.b16 %v888, %v884
        %v1009 = vpack.c.b16 %v893, %v889
        %v1010 = vpack.c.b16 %v894, %v890
        %v1011 = vpack.c.b16 %v895, %v891
        %v1012 = vpack.c.b16 %v896, %v892
        %v1013 = vpack.c.b16 %v901, %v897
        %v1014 = vpack.c.b16 %v902, %v898
        %v1015 = vpack.c.b16 %v903, %v899
        %v1016 = vpack.c.b16 %v904, %v900
        %v1017 = vpack.c.b16 %v909, %v905
        %v1018 = vpack.c.b16 %v910, %v906
        %v1019 = vpack.c.b16 %v911, %v907
        %v1020 = vpack.c.b16 %v912, %v908
        %v1021 = vpack.c.b16 %v917, %v913
        %v1022 = vpack.c.b16 %v918, %v914
        %v1023 = vpack.c.b16 %v919, %v915
        %v1024 = vpack.c.b16 %v920, %v916
        %v1025 = vpack.c.b16 %v925, %v921
        %v1026 = vpack.c.b16 %v926, %v922
        %v1027 = vpack.c.b16 %v927, %v923
        %v1028 = vpack.c.b16 %v928, %v924
        %v1029 = vpack.c.b16 %v933, %v929
        %v1030 = vpack.c.b16 %v934, %v930
        %v1031 = vpack.c.b16 %v935, %v931
        %v1032 = vpack.c.b16 %v936, %v932
        %v1033 = vpack.c.b16 %v941, %v937
        %v1034 = vpack.c.b16 %v942, %v938
        %v1035 = vpack.c.b16 %v943, %v939
        %v1036 = vpack.c.b16 %v944, %v940
        %v1037 = vpack.c.b16 %v949, %v945
        %v1038 = vpack.c.b16 %v950, %v946
        %v1039 = vpack.c.b16 %v951, %v947
        %v1040 = vpack.c.b16 %v952, %v948
        %v1041 = vpack.c.b16 %v957, %v953
        %v1042 = vpack.c.b16 %v958, %v954
        %v1043 = vpack.c.b16 %v959, %v955
        %v1044 = vpack.c.b16 %v960, %v956
        %v1045 = vpack.c.b16 %v965, %v961
        %v1046 = vpack.c.b16 %v966, %v962
        %v1047 = vpack.c.b16 %v967, %v963
        %v1048 = vpack.c.b16 %v968, %v964
        %v1049 = vpack.c.b16 %v973, %v969
        %v1050 = vpack.c.b16 %v974, %v970
        %v1051 = vpack.c.b16 %v975, %v971
        %v1052 = vpack.c.b16 %v976, %v972
        %v1053 = vpack.c.b16 %v981, %v977
        %v1054 = vpack.c.b16 %v982, %v978
        %v1055 = vpack.c.b16 %v983, %v979
        %v1056 = vpack.c.b16 %v984, %v980
        %v1057 = vpack.c.b16 %v989, %v985
        %v1058 = vpack.c.b16 %v990, %v986
        %v1059 = vpack.c.b16 %v991, %v987
        %v1060 = vpack.c.b16 %v992, %v988
        %v1061 = vpack.c.b16 %v997, %v993
        %v1062 = vpack.c.b16 %v998, %v994
        %v1063 = vpack.c.b16 %v999, %v995
        %v1064 = vpack.c.b16 %v1000, %v996
        %1129 = vmatprep.subr.bf16.mxu0 %v1002
        %1130 = vmatpush1.bf16.msra.mxu0 %v1001
        %1131 = vmatprep.subr.bf16.mxu0 %v1006
        %1132 = vmatpush1.bf16.msra.mxu0 %v1005
        %1133 = vmatprep.subr.bf16.mxu0 %v1010
        %1134 = vmatpush1.bf16.msra.mxu0 %v1009
        %1135 = vmatprep.subr.bf16.mxu0 %v1014
        %1136 = vmatpush1.bf16.msra.mxu0 %v1013
        %1137 = vmatprep.subr.bf16.mxu0 %v1018
        %1138 = vmatpush1.bf16.msra.mxu0 %v1017
        %1139 = vmatprep.subr.bf16.mxu0 %v1022
        %1140 = vmatpush1.bf16.msra.mxu0 %v1021
        %1141 = vmatprep.subr.bf16.mxu0 %v1026
        %1142 = vmatpush1.bf16.msra.mxu0 %v1025
        %1143 = vmatprep.subr.bf16.mxu0 %v1030
        %1144 = vmatpush1.bf16.msra.mxu0 %v1029
        %1145 = vmatprep.subr.bf16.mxu0 %v1034
        %1146 = vmatpush1.bf16.msra.mxu0 %v1033
        %1147 = vmatprep.subr.bf16.mxu0 %v1038
        %1148 = vmatpush1.bf16.msra.mxu0 %v1037
        %1149 = vmatprep.subr.bf16.mxu0 %v1042
        %1150 = vmatpush1.bf16.msra.mxu0 %v1041
        %1151 = vmatprep.subr.bf16.mxu0 %v1046
        %1152 = vmatpush1.bf16.msra.mxu0 %v1045
        %1153 = vmatprep.subr.bf16.mxu0 %v1050
        %1154 = vmatpush1.bf16.msra.mxu0 %v1049
        %1155 = vmatprep.subr.bf16.mxu0 %v1054
        %1156 = vmatpush1.bf16.msra.mxu0 %v1053
        %1157 = vmatprep.subr.bf16.mxu0 %v1058
        %1158 = vmatpush1.bf16.msra.mxu0 %v1057
        %1159 = vmatprep.subr.bf16.mxu0 %v1062
        %1160 = vmatpush1.bf16.msra.mxu0 %v1061
        %1161 = vmatprep.mubr.bf16.mxu0 %v692
        %1162 = vmatmul.mubr.bf16.gmra.mrb[0].mxu0 %v691
        %v1163 = vpop.f32.mrb[0].mxu0
        %v1164 = vadd.f32 %v792, %v1163
        %v1165 = vpop.f32.mrb[0].mxu0
        %v1166 = vadd.f32 %v796, %v1165
        %v1167 = vpop.f32.mrb[0].mxu0
        %v1168 = vadd.f32 %v792, %v1167
        %v1169 = vpop.f32.mrb[0].mxu0
        %v1170 = vadd.f32 %v796, %v1169
        %1171 = vmatprep.mubr.bf16.mxu0 %v694
        %1172 = vmatmul.mubr.bf16.gmra.mrb[0].mxu0 %v693
        %v1173 = vpop.f32.mrb[0].mxu0
        %v1174 = vadd.f32 %v792, %v1173
        %v1175 = vpop.f32.mrb[0].mxu0
        %v1176 = vadd.f32 %v796, %v1175
        %v1177 = vpop.f32.mrb[0].mxu0
        %v1178 = vadd.f32 %v792, %v1177
        %v1179 = vpop.f32.mrb[0].mxu0
        %v1180 = vadd.f32 %v796, %v1179
        %1181 = vmatprep.mubr.bf16.mxu0 %v696
        %1182 = vmatmul.mubr.bf16.gmra.mrb[0].mxu0 %v695
        %v1183 = vpop.f32.mrb[0].mxu0
        %v1184 = vadd.f32 %v792, %v1183
        %v1185 = vpop.f32.mrb[0].mxu0
        %v1186 = vadd.f32 %v796, %v1185
        %v1187 = vpop.f32.mrb[0].mxu0
        %v1188 = vadd.f32 %v792, %v1187
        %v1189 = vpop.f32.mrb[0].mxu0
        %v1190 = vadd.f32 %v796, %v1189
        %1191 = vmatprep.mubr.bf16.mxu0 %v698
        %1192 = vmatmul.mubr.bf16.gmra.mrb[0].mxu0 %v697
        %v1193 = vpop.f32.mrb[0].mxu0
        %v1194 = vadd.f32 %v792, %v1193
        %v1195 = vpop.f32.mrb[0].mxu0
        %v1196 = vadd.f32 %v796, %v1195
        %v1197 = vpop.f32.mrb[0].mxu0
        %v1198 = vadd.f32 %v792, %v1197
        %v1199 = vpop.f32.mrb[0].mxu0
        %v1200 = vadd.f32 %v796, %v1199
        %1201 = vmatprep.mubr.bf16.mxu0 %v700
        %1202 = vmatmul.mubr.bf16.gmra.mrb[0].mxu0 %v699
        %v1203 = vpop.f32.mrb[0].mxu0
        %v1204 = vadd.f32 %v792, %v1203
        %v1205 = vpop.f32.mrb[0].mxu0
        %v1206 = vadd.f32 %v796, %v1205
        %v1207 = vpop.f32.mrb[0].mxu0
        %v1208 = vadd.f32 %v792, %v1207
        %v1209 = vpop.f32.mrb[0].mxu0
        %v1210 = vadd.f32 %v796, %v1209
        %1211 = vmatprep.mubr.bf16.mxu0 %v702
        %1212 = vmatmul.mubr.bf16.gmra.mrb[0].mxu0 %v701
        %v1213 = vpop.f32.mrb[0].mxu0
        %v1214 = vadd.f32 %v792, %v1213
        %v1215 = vpop.f32.mrb[0].mxu0
        %v1216 = vadd.f32 %v796, %v1215
        %v1217 = vpop.f32.mrb[0].mxu0
        %v1218 = vadd.f32 %v792, %v1217
        %v1219 = vpop.f32.mrb[0].mxu0
        %v1220 = vadd.f32 %v796, %v1219
        %1221 = vmatprep.mubr.bf16.mxu0 %v704
        %1222 = vmatmul.mubr.bf16.gmra.mrb[0].mxu0 %v703
        %v1223 = vpop.f32.mrb[0].mxu0
        %v1224 = vadd.f32 %v792, %v1223
        %v1225 = vpop.f32.mrb[0].mxu0
        %v1226 = vadd.f32 %v796, %v1225
        %v1227 = vpop.f32.mrb[0].mxu0
        %v1228 = vadd.f32 %v792, %v1227
        %v1229 = vpop.f32.mrb[0].mxu0
        %v1230 = vadd.f32 %v796, %v1229
        %1231 = vmatprep.mubr.bf16.mxu0 %v706
        %1232 = vmatmul.mubr.bf16.gmra.mrb[0].mxu0 %v705
        %v1233 = vpop.f32.mrb[0].mxu0
        %v1234 = vadd.f32 %v792, %v1233
        %v1235 = vpop.f32.mrb[0].mxu0
        %v1236 = vadd.f32 %v796, %v1235
        %v1237 = vpop.f32.mrb[0].mxu0
        %v1238 = vadd.f32 %v792, %v1237
        %v1239 = vpop.f32.mrb[0].mxu0
        %v1240 = vadd.f32 %v796, %v1239
        %1241 = vmatprep.mubr.bf16.mxu0 %v708
        %1242 = vmatmul.mubr.bf16.gmra.mrb[0].mxu0 %v707
        %v1243 = vpop.f32.mrb[0].mxu0
        %v1244 = vadd.f32 %v792, %v1243
        %v1245 = vpop.f32.mrb[0].mxu0
        %v1246 = vadd.f32 %v796, %v1245
        %v1247 = vpop.f32.mrb[0].mxu0
        %v1248 = vadd.f32 %v792, %v1247
        %v1249 = vpop.f32.mrb[0].mxu0
        %v1250 = vadd.f32 %v796, %v1249
        %1251 = vmatprep.mubr.bf16.mxu0 %v710
        %1252 = vmatmul.mubr.bf16.gmra.mrb[0].mxu0 %v709
        %v1253 = vpop.f32.mrb[0].mxu0
        %v1254 = vadd.f32 %v792, %v1253
        %v1255 = vpop.f32.mrb[0].mxu0
        %v1256 = vadd.f32 %v796, %v1255
        %v1257 = vpop.f32.mrb[0].mxu0
        %v1258 = vadd.f32 %v792, %v1257
        %v1259 = vpop.f32.mrb[0].mxu0
        %v1260 = vadd.f32 %v796, %v1259
        %1261 = vmatprep.mubr.bf16.mxu0 %v712
        %1262 = vmatmul.mubr.bf16.gmra.mrb[0].mxu0 %v711
        %v1263 = vpop.f32.mrb[0].mxu0
        %v1264 = vadd.f32 %v792, %v1263
        %v1265 = vpop.f32.mrb[0].mxu0
        %v1266 = vadd.f32 %v796, %v1265
        %v1267 = vpop.f32.mrb[0].mxu0
        %v1268 = vadd.f32 %v792, %v1267
        %v1269 = vpop.f32.mrb[0].mxu0
        %v1270 = vadd.f32 %v796, %v1269
        %1271 = vmatprep.mubr.bf16.mxu0 %v714
        %1272 = vmatmul.mubr.bf16.gmra.mrb[0].mxu0 %v713
        %v1273 = vpop.f32.mrb[0].mxu0
        %v1274 = vadd.f32 %v792, %v1273
        %v1275 = vpop.f32.mrb[0].mxu0
        %v1276 = vadd.f32 %v796, %v1275
        %v1277 = vpop.f32.mrb[0].mxu0
        %v1278 = vadd.f32 %v792, %v1277
        %v1279 = vpop.f32.mrb[0].mxu0
        %v1280 = vadd.f32 %v796, %v1279
        %1281 = vmatprep.mubr.bf16.mxu0 %v716
        %1282 = vmatmul.mubr.bf16.gmra.mrb[0].mxu0 %v715
        %v1283 = vpop.f32.mrb[0].mxu0
        %v1284 = vadd.f32 %v792, %v1283
        %v1285 = vpop.f32.mrb[0].mxu0
        %v1286 = vadd.f32 %v796, %v1285
        %v1287 = vpop.f32.mrb[0].mxu0
        %v1288 = vadd.f32 %v792, %v1287
        %v1289 = vpop.f32.mrb[0].mxu0
        %v1290 = vadd.f32 %v796, %v1289
        %1291 = vmatprep.mubr.bf16.mxu0 %v718
        %1292 = vmatmul.mubr.bf16.gmra.mrb[0].mxu0 %v717
        %v1293 = vpop.f32.mrb[0].mxu0
        %v1294 = vadd.f32 %v792, %v1293
        %v1295 = vpop.f32.mrb[0].mxu0
        %v1296 = vadd.f32 %v796, %v1295
        %v1297 = vpop.f32.mrb[0].mxu0
        %v1298 = vadd.f32 %v792, %v1297
        %v1299 = vpop.f32.mrb[0].mxu0
        %v1300 = vadd.f32 %v796, %v1299
        %1301 = vmatprep.mubr.bf16.mxu0 %v720
        %1302 = vmatmul.mubr.bf16.gmra.mrb[0].mxu0 %v719
        %v1303 = vpop.f32.mrb[0].mxu0
        %v1304 = vadd.f32 %v792, %v1303
        %v1305 = vpop.f32.mrb[0].mxu0
        %v1306 = vadd.f32 %v796, %v1305
        %v1307 = vpop.f32.mrb[0].mxu0
        %v1308 = vadd.f32 %v792, %v1307
        %v1309 = vpop.f32.mrb[0].mxu0
        %v1310 = vadd.f32 %v796, %v1309
        %1311 = vmatprep.mubr.bf16.mxu0 %v722
        %1312 = vmatmul.mubr.bf16.gmra.mrb[0].mxu0 %v721
        %v1313 = vpop.f32.mrb[0].mxu0
        %v1314 = vadd.f32 %v792, %v1313
        %v1315 = vpop.f32.mrb[0].mxu0
        %v1316 = vadd.f32 %v796, %v1315
        %v1317 = vpop.f32.mrb[0].mxu0
        %v1318 = vadd.f32 %v792, %v1317
        %v1319 = vpop.f32.mrb[0].mxu0
        %v1320 = vadd.f32 %v796, %v1319
        %1321 = vdwg.mxu0
        %1322 = vmatprep.subr.bf16.mxu0 %v1004
        %1323 = vmatpush1.bf16.msra.mxu0 %v1003
        %1324 = vmatprep.subr.bf16.mxu0 %v1008
        %1325 = vmatpush1.bf16.msra.mxu0 %v1007
        %1326 = vmatprep.subr.bf16.mxu0 %v1012
        %1327 = vmatpush1.bf16.msra.mxu0 %v1011
        %1328 = vmatprep.subr.bf16.mxu0 %v1016
        %1329 = vmatpush1.bf16.msra.mxu0 %v1015
        %1330 = vmatprep.subr.bf16.mxu0 %v1020
        %1331 = vmatpush1.bf16.msra.mxu0 %v1019
        %1332 = vmatprep.subr.bf16.mxu0 %v1024
        %1333 = vmatpush1.bf16.msra.mxu0 %v1023
        %1334 = vmatprep.subr.bf16.mxu0 %v1028
        %1335 = vmatpush1.bf16.msra.mxu0 %v1027
        %1336 = vmatprep.subr.bf16.mxu0 %v1032
        %1337 = vmatpush1.bf16.msra.mxu0 %v1031
        %1338 = vmatprep.subr.bf16.mxu0 %v1036
        %1339 = vmatpush1.bf16.msra.mxu0 %v1035
        %1340 = vmatprep.subr.bf16.mxu0 %v1040
        %1341 = vmatpush1.bf16.msra.mxu0 %v1039
        %1342 = vmatprep.subr.bf16.mxu0 %v1044
        %1343 = vmatpush1.bf16.msra.mxu0 %v1043
        %1344 = vmatprep.subr.bf16.mxu0 %v1048
        %1345 = vmatpush1.bf16.msra.mxu0 %v1047
        %1346 = vmatprep.subr.bf16.mxu0 %v1052
        %1347 = vmatpush1.bf16.msra.mxu0 %v1051
        %1348 = vmatprep.subr.bf16.mxu0 %v1056
        %1349 = vmatpush1.bf16.msra.mxu0 %v1055
        %1350 = vmatprep.subr.bf16.mxu0 %v1060
        %1351 = vmatpush1.bf16.msra.mxu0 %v1059
        %1352 = vmatprep.subr.bf16.mxu0 %v1064
        %1353 = vmatpush1.bf16.msra.mxu0 %v1063
        %1354 = vmatprep.mubr.bf16.mxu0 %v692
        %1355 = vmatmul.mubr.bf16.gmra.mrb[0].mxu0 %v691
        %v1356 = vpop.f32.mrb[0].mxu0
        %v1357 = vadd.f32 %v800, %v1356
        %v1358 = vpop.f32.mrb[0].mxu0
        %v1359 = vadd.f32 %v804, %v1358
        %v1360 = vpop.f32.mrb[0].mxu0
        %v1361 = vadd.f32 %v800, %v1360
        %v1362 = vpop.f32.mrb[0].mxu0
        %v1363 = vadd.f32 %v804, %v1362
        %1364 = vmatprep.mubr.bf16.mxu0 %v694
        %1365 = vmatmul.mubr.bf16.gmra.mrb[0].mxu0 %v693
        %v1366 = vpop.f32.mrb[0].mxu0
        %v1367 = vadd.f32 %v800, %v1366
        %v1368 = vpop.f32.mrb[0].mxu0
        %v1369 = vadd.f32 %v804, %v1368
        %v1370 = vpop.f32.mrb[0].mxu0
        %v1371 = vadd.f32 %v800, %v1370
        %v1372 = vpop.f32.mrb[0].mxu0
        %v1373 = vadd.f32 %v804, %v1372
        %1374 = vmatprep.mubr.bf16.mxu0 %v696
        %1375 = vmatmul.mubr.bf16.gmra.mrb[0].mxu0 %v695
        %v1376 = vpop.f32.mrb[0].mxu0
        %v1377 = vadd.f32 %v800, %v1376
        %v1378 = vpop.f32.mrb[0].mxu0
        %v1379 = vadd.f32 %v804, %v1378
        %v1380 = vpop.f32.mrb[0].mxu0
        %v1381 = vadd.f32 %v800, %v1380
        %v1382 = vpop.f32.mrb[0].mxu0
        %v1383 = vadd.f32 %v804, %v1382
        %1384 = vmatprep.mubr.bf16.mxu0 %v698
        %1385 = vmatmul.mubr.bf16.gmra.mrb[0].mxu0 %v697
        %v1386 = vpop.f32.mrb[0].mxu0
        %v1387 = vadd.f32 %v800, %v1386
        %v1388 = vpop.f32.mrb[0].mxu0
        %v1389 = vadd.f32 %v804, %v1388
        %v1390 = vpop.f32.mrb[0].mxu0
        %v1391 = vadd.f32 %v800, %v1390
        %v1392 = vpop.f32.mrb[0].mxu0
        %v1393 = vadd.f32 %v804, %v1392
        %1394 = vmatprep.mubr.bf16.mxu0 %v700
        %1395 = vmatmul.mubr.bf16.gmra.mrb[0].mxu0 %v699
        %v1396 = vpop.f32.mrb[0].mxu0
        %v1397 = vadd.f32 %v800, %v1396
        %v1398 = vpop.f32.mrb[0].mxu0
        %v1399 = vadd.f32 %v804, %v1398
        %v1400 = vpop.f32.mrb[0].mxu0
        %v1401 = vadd.f32 %v800, %v1400
        %v1402 = vpop.f32.mrb[0].mxu0
        %v1403 = vadd.f32 %v804, %v1402
        %1404 = vmatprep.mubr.bf16.mxu0 %v702
        %1405 = vmatmul.mubr.bf16.gmra.mrb[0].mxu0 %v701
        %v1406 = vpop.f32.mrb[0].mxu0
        %v1407 = vadd.f32 %v800, %v1406
        %v1408 = vpop.f32.mrb[0].mxu0
        %v1409 = vadd.f32 %v804, %v1408
        %v1410 = vpop.f32.mrb[0].mxu0
        %v1411 = vadd.f32 %v800, %v1410
        %v1412 = vpop.f32.mrb[0].mxu0
        %v1413 = vadd.f32 %v804, %v1412
        %1414 = vmatprep.mubr.bf16.mxu0 %v704
        %1415 = vmatmul.mubr.bf16.gmra.mrb[0].mxu0 %v703
        %v1416 = vpop.f32.mrb[0].mxu0
        %v1417 = vadd.f32 %v800, %v1416
        %v1418 = vpop.f32.mrb[0].mxu0
        %v1419 = vadd.f32 %v804, %v1418
        %v1420 = vpop.f32.mrb[0].mxu0
        %v1421 = vadd.f32 %v800, %v1420
        %v1422 = vpop.f32.mrb[0].mxu0
        %v1423 = vadd.f32 %v804, %v1422
        %1424 = vmatprep.mubr.bf16.mxu0 %v706
        %1425 = vmatmul.mubr.bf16.gmra.mrb[0].mxu0 %v705
        %v1426 = vpop.f32.mrb[0].mxu0
        %v1427 = vadd.f32 %v800, %v1426
        %v1428 = vpop.f32.mrb[0].mxu0
        %v1429 = vadd.f32 %v804, %v1428
        %v1430 = vpop.f32.mrb[0].mxu0
        %v1431 = vadd.f32 %v800, %v1430
        %v1432 = vpop.f32.mrb[0].mxu0
        %v1433 = vadd.f32 %v804, %v1432
        %1434 = vmatprep.mubr.bf16.mxu0 %v708
        %1435 = vmatmul.mubr.bf16.gmra.mrb[0].mxu0 %v707
        %v1436 = vpop.f32.mrb[0].mxu0
        %v1437 = vadd.f32 %v800, %v1436
        %v1438 = vpop.f32.mrb[0].mxu0
        %v1439 = vadd.f32 %v804, %v1438
        %v1440 = vpop.f32.mrb[0].mxu0
        %v1441 = vadd.f32 %v800, %v1440
        %v1442 = vpop.f32.mrb[0].mxu0
        %v1443 = vadd.f32 %v804, %v1442
        %1444 = vmatprep.mubr.bf16.mxu0 %v710
        %1445 = vmatmul.mubr.bf16.gmra.mrb[0].mxu0 %v709
        %v1446 = vpop.f32.mrb[0].mxu0
        %v1447 = vadd.f32 %v800, %v1446
        %v1448 = vpop.f32.mrb[0].mxu0
        %v1449 = vadd.f32 %v804, %v1448
        %v1450 = vpop.f32.mrb[0].mxu0
        %v1451 = vadd.f32 %v800, %v1450
        %v1452 = vpop.f32.mrb[0].mxu0
        %v1453 = vadd.f32 %v804, %v1452
        %1454 = vmatprep.mubr.bf16.mxu0 %v712
        %1455 = vmatmul.mubr.bf16.gmra.mrb[0].mxu0 %v711
        %v1456 = vpop.f32.mrb[0].mxu0
        %v1457 = vadd.f32 %v800, %v1456
        %v1458 = vpop.f32.mrb[0].mxu0
        %v1459 = vadd.f32 %v804, %v1458
        %v1460 = vpop.f32.mrb[0].mxu0
        %v1461 = vadd.f32 %v800, %v1460
        %v1462 = vpop.f32.mrb[0].mxu0
        %v1463 = vadd.f32 %v804, %v1462
        %1464 = vmatprep.mubr.bf16.mxu0 %v714
        %1465 = vmatmul.mubr.bf16.gmra.mrb[0].mxu0 %v713
        %v1466 = vpop.f32.mrb[0].mxu0
        %v1467 = vadd.f32 %v800, %v1466
        %v1468 = vpop.f32.mrb[0].mxu0
        %v1469 = vadd.f32 %v804, %v1468
        %v1470 = vpop.f32.mrb[0].mxu0
        %v1471 = vadd.f32 %v800, %v1470
        %v1472 = vpop.f32.mrb[0].mxu0
        %v1473 = vadd.f32 %v804, %v1472
        %1474 = vmatprep.mubr.bf16.mxu0 %v716
        %1475 = vmatmul.mubr.bf16.gmra.mrb[0].mxu0 %v715
        %v1476 = vpop.f32.mrb[0].mxu0
        %v1477 = vadd.f32 %v800, %v1476
        %v1478 = vpop.f32.mrb[0].mxu0
        %v1479 = vadd.f32 %v804, %v1478
        %v1480 = vpop.f32.mrb[0].mxu0
        %v1481 = vadd.f32 %v800, %v1480
        %v1482 = vpop.f32.mrb[0].mxu0
        %v1483 = vadd.f32 %v804, %v1482
        %1484 = vmatprep.mubr.bf16.mxu0 %v718
        %1485 = vmatmul.mubr.bf16.gmra.mrb[0].mxu0 %v717
        %v1486 = vpop.f32.mrb[0].mxu0
        %v1487 = vadd.f32 %v800, %v1486
        %v1488 = vpop.f32.mrb[0].mxu0
        %v1489 = vadd.f32 %v804, %v1488
        %v1490 = vpop.f32.mrb[0].mxu0
        %v1491 = vadd.f32 %v800, %v1490
        %v1492 = vpop.f32.mrb[0].mxu0
        %v1493 = vadd.f32 %v804, %v1492
        %1494 = vmatprep.mubr.bf16.mxu0 %v720
        %1495 = vmatmul.mubr.bf16.gmra.mrb[0].mxu0 %v719
        %v1496 = vpop.f32.mrb[0].mxu0
        %v1497 = vadd.f32 %v800, %v1496
        %v1498 = vpop.f32.mrb[0].mxu0
        %v1499 = vadd.f32 %v804, %v1498
        %v1500 = vpop.f32.mrb[0].mxu0
        %v1501 = vadd.f32 %v800, %v1500
        %v1502 = vpop.f32.mrb[0].mxu0
        %v1503 = vadd.f32 %v804, %v1502
        %1504 = vmatprep.mubr.bf16.mxu0 %v722
        %1505 = vmatmul.mubr.bf16.gmra.mrb[0].mxu0 %v721
        %v1506 = vpop.f32.mrb[0].mxu0
        %v1507 = vadd.f32 %v800, %v1506
        %v1508 = vpop.f32.mrb[0].mxu0
        %v1509 = vadd.f32 %v804, %v1508
        %v1510 = vpop.f32.mrb[0].mxu0
        %v1511 = vadd.f32 %v800, %v1510
        %v1512 = vpop.f32.mrb[0].mxu0
        %v1513 = vadd.f32 %v804, %v1512
        %1514 = vdwg.mxu0
        %v1515 = vmax.f32 %v1164, 0.0
        %v1516 = vmax.f32 %v1166, 0.0
        %v1517 = vmax.f32 %v1357, 0.0
        %v1518 = vmax.f32 %v1359, 0.0
        %v1519 = vmax.f32 %v1168, 0.0
        %v1520 = vmax.f32 %v1170, 0.0
        %v1521 = vmax.f32 %v1361, 0.0
        %v1522 = vmax.f32 %v1363, 0.0
        %v1523 = vmax.f32 %v1174, 0.0
        %v1524 = vmax.f32 %v1176, 0.0
        %v1525 = vmax.f32 %v1367, 0.0
        %v1526 = vmax.f32 %v1369, 0.0
        %v1527 = vmax.f32 %v1178, 0.0
        %v1528 = vmax.f32 %v1180, 0.0
        %v1529 = vmax.f32 %v1371, 0.0
        %v1530 = vmax.f32 %v1373, 0.0
        %v1531 = vmax.f32 %v1184, 0.0
        %v1532 = vmax.f32 %v1186, 0.0
        %v1533 = vmax.f32 %v1377, 0.0
        %v1534 = vmax.f32 %v1379, 0.0
        %v1535 = vmax.f32 %v1188, 0.0
        %v1536 = vmax.f32 %v1190, 0.0
        %v1537 = vmax.f32 %v1381, 0.0
        %v1538 = vmax.f32 %v1383, 0.0
        %v1539 = vmax.f32 %v1194, 0.0
        %v1540 = vmax.f32 %v1196, 0.0
        %v1541 = vmax.f32 %v1387, 0.0
        %v1542 = vmax.f32 %v1389, 0.0
        %v1543 = vmax.f32 %v1198, 0.0
        %v1544 = vmax.f32 %v1200, 0.0
        %v1545 = vmax.f32 %v1391, 0.0
        %v1546 = vmax.f32 %v1393, 0.0
        %v1547 = vmax.f32 %v1204, 0.0
        %v1548 = vmax.f32 %v1206, 0.0
        %v1549 = vmax.f32 %v1397, 0.0
        %v1550 = vmax.f32 %v1399, 0.0
        %v1551 = vmax.f32 %v1208, 0.0
        %v1552 = vmax.f32 %v1210, 0.0
        %v1553 = vmax.f32 %v1401, 0.0
        %v1554 = vmax.f32 %v1403, 0.0
        %v1555 = vmax.f32 %v1214, 0.0
        %v1556 = vmax.f32 %v1216, 0.0
        %v1557 = vmax.f32 %v1407, 0.0
        %v1558 = vmax.f32 %v1409, 0.0
        %v1559 = vmax.f32 %v1218, 0.0
        %v1560 = vmax.f32 %v1220, 0.0
        %v1561 = vmax.f32 %v1411, 0.0
        %v1562 = vmax.f32 %v1413, 0.0
        %v1563 = vmax.f32 %v1224, 0.0
        %v1564 = vmax.f32 %v1226, 0.0
        %v1565 = vmax.f32 %v1417, 0.0
        %v1566 = vmax.f32 %v1419, 0.0
        %v1567 = vmax.f32 %v1228, 0.0
        %v1568 = vmax.f32 %v1230, 0.0
        %v1569 = vmax.f32 %v1421, 0.0
        %v1570 = vmax.f32 %v1423, 0.0
        %v1571 = vmax.f32 %v1234, 0.0
        %v1572 = vmax.f32 %v1236, 0.0
        %v1573 = vmax.f32 %v1427, 0.0
        %v1574 = vmax.f32 %v1429, 0.0
        %v1575 = vmax.f32 %v1238, 0.0
        %v1576 = vmax.f32 %v1240, 0.0
        %v1577 = vmax.f32 %v1431, 0.0
        %v1578 = vmax.f32 %v1433, 0.0
        %v1579 = vmax.f32 %v1244, 0.0
        %v1580 = vmax.f32 %v1246, 0.0
        %v1581 = vmax.f32 %v1437, 0.0
        %v1582 = vmax.f32 %v1439, 0.0
        %v1583 = vmax.f32 %v1248, 0.0
        %v1584 = vmax.f32 %v1250, 0.0
        %v1585 = vmax.f32 %v1441, 0.0
        %v1586 = vmax.f32 %v1443, 0.0
        %v1587 = vmax.f32 %v1254, 0.0
        %v1588 = vmax.f32 %v1256, 0.0
        %v1589 = vmax.f32 %v1447, 0.0
        %v1590 = vmax.f32 %v1449, 0.0
        %v1591 = vmax.f32 %v1258, 0.0
        %v1592 = vmax.f32 %v1260, 0.0
        %v1593 = vmax.f32 %v1451, 0.0
        %v1594 = vmax.f32 %v1453, 0.0
        %v1595 = vmax.f32 %v1264, 0.0
        %v1596 = vmax.f32 %v1266, 0.0
        %v1597 = vmax.f32 %v1457, 0.0
        %v1598 = vmax.f32 %v1459, 0.0
        %v1599 = vmax.f32 %v1268, 0.0
        %v1600 = vmax.f32 %v1270, 0.0
        %v1601 = vmax.f32 %v1461, 0.0
        %v1602 = vmax.f32 %v1463, 0.0
        %v1603 = vmax.f32 %v1274, 0.0
        %v1604 = vmax.f32 %v1276, 0.0
        %v1605 = vmax.f32 %v1467, 0.0
        %v1606 = vmax.f32 %v1469, 0.0
        %v1607 = vmax.f32 %v1278, 0.0
        %v1608 = vmax.f32 %v1280, 0.0
        %v1609 = vmax.f32 %v1471, 0.0
        %v1610 = vmax.f32 %v1473, 0.0
        %v1611 = vmax.f32 %v1284, 0.0
        %v1612 = vmax.f32 %v1286, 0.0
        %v1613 = vmax.f32 %v1477, 0.0
        %v1614 = vmax.f32 %v1479, 0.0
        %v1615 = vmax.f32 %v1288, 0.0
        %v1616 = vmax.f32 %v1290, 0.0
        %v1617 = vmax.f32 %v1481, 0.0
        %v1618 = vmax.f32 %v1483, 0.0
        %v1619 = vmax.f32 %v1294, 0.0
        %v1620 = vmax.f32 %v1296, 0.0
        %v1621 = vmax.f32 %v1487, 0.0
        %v1622 = vmax.f32 %v1489, 0.0
        %v1623 = vmax.f32 %v1298, 0.0
        %v1624 = vmax.f32 %v1300, 0.0
        %v1625 = vmax.f32 %v1491, 0.0
        %v1626 = vmax.f32 %v1493, 0.0
        %v1627 = vmax.f32 %v1304, 0.0
        %v1628 = vmax.f32 %v1306, 0.0
        %v1629 = vmax.f32 %v1497, 0.0
        %v1630 = vmax.f32 %v1499, 0.0
        %v1631 = vmax.f32 %v1308, 0.0
        %v1632 = vmax.f32 %v1310, 0.0
        %v1633 = vmax.f32 %v1501, 0.0
        %v1634 = vmax.f32 %v1503, 0.0
        %v1635 = vmax.f32 %v1314, 0.0
        %v1636 = vmax.f32 %v1316, 0.0
        %v1637 = vmax.f32 %v1507, 0.0
        %v1638 = vmax.f32 %v1509, 0.0
        %v1639 = vmax.f32 %v1318, 0.0
        %v1640 = vmax.f32 %v1320, 0.0
        %v1641 = vmax.f32 %v1511, 0.0
        %v1642 = vmax.f32 %v1513, 0.0
        %v1643 = vpack.c.bf16 %v1519, %v1515
        %v1644 = vpack.c.bf16 %v1520, %v1516
        %v1645 = vpack.c.bf16 %v1521, %v1517
        %v1646 = vpack.c.bf16 %v1522, %v1518
        %v1647 = vpack.c.bf16 %v1527, %v1523
        %v1648 = vpack.c.bf16 %v1528, %v1524
        %v1649 = vpack.c.bf16 %v1529, %v1525
        %v1650 = vpack.c.bf16 %v1530, %v1526
        %v1651 = vpack.c.bf16 %v1535, %v1531
        %v1652 = vpack.c.bf16 %v1536, %v1532
        %v1653 = vpack.c.bf16 %v1537, %v1533
        %v1654 = vpack.c.bf16 %v1538, %v1534
        %v1655 = vpack.c.bf16 %v1543, %v1539
        %v1656 = vpack.c.bf16 %v1544, %v1540
        %v1657 = vpack.c.bf16 %v1545, %v1541
        %v1658 = vpack.c.bf16 %v1546, %v1542
        %v1659 = vpack.c.bf16 %v1551, %v1547
        %v1660 = vpack.c.bf16 %v1552, %v1548
        %v1661 = vpack.c.bf16 %v1553, %v1549
        %v1662 = vpack.c.bf16 %v1554, %v1550
        %v1663 = vpack.c.bf16 %v1559, %v1555
        %v1664 = vpack.c.bf16 %v1560, %v1556
        %v1665 = vpack.c.bf16 %v1561, %v1557
        %v1666 = vpack.c.bf16 %v1562, %v1558
        %v1667 = vpack.c.bf16 %v1567, %v1563
        %v1668 = vpack.c.bf16 %v1568, %v1564
        %v1669 = vpack.c.bf16 %v1569, %v1565
        %v1670 = vpack.c.bf16 %v1570, %v1566
        %v1671 = vpack.c.bf16 %v1575, %v1571
        %v1672 = vpack.c.bf16 %v1576, %v1572
        %v1673 = vpack.c.bf16 %v1577, %v1573
        %v1674 = vpack.c.bf16 %v1578, %v1574
        %v1675 = vpack.c.bf16 %v1583, %v1579
        %v1676 = vpack.c.bf16 %v1584, %v1580
        %v1677 = vpack.c.bf16 %v1585, %v1581
        %v1678 = vpack.c.bf16 %v1586, %v1582
        %v1679 = vpack.c.bf16 %v1591, %v1587
        %v1680 = vpack.c.bf16 %v1592, %v1588
        %v1681 = vpack.c.bf16 %v1593, %v1589
        %v1682 = vpack.c.bf16 %v1594, %v1590
        %v1683 = vpack.c.bf16 %v1599, %v1595
        %v1684 = vpack.c.bf16 %v1600, %v1596
        %v1685 = vpack.c.bf16 %v1601, %v1597
        %v1686 = vpack.c.bf16 %v1602, %v1598
        %v1687 = vpack.c.bf16 %v1607, %v1603
        %v1688 = vpack.c.bf16 %v1608, %v1604
        %v1689 = vpack.c.bf16 %v1609, %v1605
        %v1690 = vpack.c.bf16 %v1610, %v1606
        %v1691 = vpack.c.bf16 %v1615, %v1611
        %v1692 = vpack.c.bf16 %v1616, %v1612
        %v1693 = vpack.c.bf16 %v1617, %v1613
        %v1694 = vpack.c.bf16 %v1618, %v1614
        %v1695 = vpack.c.bf16 %v1623, %v1619
        %v1696 = vpack.c.bf16 %v1624, %v1620
        %v1697 = vpack.c.bf16 %v1625, %v1621
        %v1698 = vpack.c.bf16 %v1626, %v1622
        %v1699 = vpack.c.bf16 %v1631, %v1627
        %v1700 = vpack.c.bf16 %v1632, %v1628
        %v1701 = vpack.c.bf16 %v1633, %v1629
        %v1702 = vpack.c.bf16 %v1634, %v1630
        %v1703 = vpack.c.bf16 %v1639, %v1635
        %v1704 = vpack.c.bf16 %v1640, %v1636
        %v1705 = vpack.c.bf16 %v1641, %v1637
        %v1706 = vpack.c.bf16 %v1642, %v1638
        %v1707 = vld [vmem:[#allocation2] sm:$0xf]
        %v1708 = vld [vmem:[#allocation2 + $0x4] sm:$0xf]
        %v1709 = vld [vmem:[#allocation2 + $0x8] sm:$0xf]
        %v1710 = vld [vmem:[#allocation2 + $0xc] sm:$0xf]
        %v1711 = vld [vmem:[#allocation2 + $0x10] sm:$0xf]
        %v1712 = vld [vmem:[#allocation2 + $0x14] sm:$0xf]
        %v1713 = vld [vmem:[#allocation2 + $0x18] sm:$0xf]
        %v1714 = vld [vmem:[#allocation2 + $0x1c] sm:$0xf]
        %v1715 = vld [vmem:[#allocation2 + $0x20] sm:$0xf]
        %v1716 = vld [vmem:[#allocation2 + $0x24] sm:$0xf]
        %v1717 = vld [vmem:[#allocation2 + $0x28] sm:$0xf]
        %v1718 = vld [vmem:[#allocation2 + $0x2c] sm:$0xf]
        %v1719 = vld [vmem:[#allocation2 + $0x30] sm:$0xf]
        %v1720 = vld [vmem:[#allocation2 + $0x34] sm:$0xf]
        %v1721 = vld [vmem:[#allocation2 + $0x38] sm:$0xf]
        %v1722 = vld [vmem:[#allocation2 + $0x3c] sm:$0xf]
        %v1723 = vld [vmem:[#allocation2 + $0x40] sm:$0xf]
        %v1724 = vld [vmem:[#allocation2 + $0x44] sm:$0xf]
        %v1725 = vld [vmem:[#allocation2 + $0x48] sm:$0xf]
        %v1726 = vld [vmem:[#allocation2 + $0x4c] sm:$0xf]
        %v1727 = vld [vmem:[#allocation2 + $0x50] sm:$0xf]
        %v1728 = vld [vmem:[#allocation2 + $0x54] sm:$0xf]
        %v1729 = vld [vmem:[#allocation2 + $0x58] sm:$0xf]
        %v1730 = vld [vmem:[#allocation2 + $0x5c] sm:$0xf]
        %v1731 = vld [vmem:[#allocation2 + $0x60] sm:$0xf]
        %v1732 = vld [vmem:[#allocation2 + $0x64] sm:$0xf]
        %v1733 = vld [vmem:[#allocation2 + $0x68] sm:$0xf]
        %v1734 = vld [vmem:[#allocation2 + $0x6c] sm:$0xf]
        %v1735 = vld [vmem:[#allocation2 + $0x70] sm:$0xf]
        %v1736 = vld [vmem:[#allocation2 + $0x74] sm:$0xf]
        %v1737 = vld [vmem:[#allocation2 + $0x78] sm:$0xf]
        %v1738 = vld [vmem:[#allocation2 + $0x7c] sm:$0xf]
        %v1739 = vld [vmem:[#allocation2 + $0x80] sm:$0xf]
        %v1740 = vld [vmem:[#allocation2 + $0x84] sm:$0xf]
        %v1741 = vld [vmem:[#allocation2 + $0x88] sm:$0xf]
        %v1742 = vld [vmem:[#allocation2 + $0x8c] sm:$0xf]
        %v1743 = vld [vmem:[#allocation2 + $0x90] sm:$0xf]
        %v1744 = vld [vmem:[#allocation2 + $0x94] sm:$0xf]
        %v1745 = vld [vmem:[#allocation2 + $0x98] sm:$0xf]
        %v1746 = vld [vmem:[#allocation2 + $0x9c] sm:$0xf]
        %v1747 = vld [vmem:[#allocation2 + $0xa0] sm:$0xf]
        %v1748 = vld [vmem:[#allocation2 + $0xa4] sm:$0xf]
        %v1749 = vld [vmem:[#allocation2 + $0xa8] sm:$0xf]
        %v1750 = vld [vmem:[#allocation2 + $0xac] sm:$0xf]
        %v1751 = vld [vmem:[#allocation2 + $0xb0] sm:$0xf]
        %v1752 = vld [vmem:[#allocation2 + $0xb4] sm:$0xf]
        %v1753 = vld [vmem:[#allocation2 + $0xb8] sm:$0xf]
        %v1754 = vld [vmem:[#allocation2 + $0xbc] sm:$0xf]
        %v1755 = vld [vmem:[#allocation2 + $0xc0] sm:$0xf]
        %v1756 = vld [vmem:[#allocation2 + $0xc4] sm:$0xf]
        %v1757 = vld [vmem:[#allocation2 + $0xc8] sm:$0xf]
        %v1758 = vld [vmem:[#allocation2 + $0xcc] sm:$0xf]
        %v1759 = vld [vmem:[#allocation2 + $0xd0] sm:$0xf]
        %v1760 = vld [vmem:[#allocation2 + $0xd4] sm:$0xf]
        %v1761 = vld [vmem:[#allocation2 + $0xd8] sm:$0xf]
        %v1762 = vld [vmem:[#allocation2 + $0xdc] sm:$0xf]
        %v1763 = vld [vmem:[#allocation2 + $0xe0] sm:$0xf]
        %v1764 = vld [vmem:[#allocation2 + $0xe4] sm:$0xf]
        %v1765 = vld [vmem:[#allocation2 + $0xe8] sm:$0xf]
        %v1766 = vld [vmem:[#allocation2 + $0xec] sm:$0xf]
        %v1767 = vld [vmem:[#allocation2 + $0xf0] sm:$0xf]
        %v1768 = vld [vmem:[#allocation2 + $0xf4] sm:$0xf]
        %v1769 = vld [vmem:[#allocation2 + $0xf8] sm:$0xf]
        %v1770 = vld [vmem:[#allocation2 + $0xfc] sm:$0xf]
        %v1771 = vld [vmem:[%s6] sm:$0x1]
        %v1773 = vlaneseq
        %v1774 = vshrl.u32 %v1773, 7
        %v1775 = vsub.s32 0, %v1774
        %v1776 = vrot.slane %v1771, %v1775
        %v1842 = vunpack.c.l.b16 %v1707
        %v1843 = vunpack.c.l.b16 %v1708
        %v1844 = vunpack.c.l.b16 %v1709
        %v1845 = vunpack.c.l.b16 %v1710
        %v1846 = vunpack.c.l.b16 %v1711
        %v1847 = vunpack.c.l.b16 %v1712
        %v1848 = vunpack.c.l.b16 %v1713
        %v1849 = vunpack.c.l.b16 %v1714
        %v1850 = vunpack.c.l.b16 %v1715
        %v1851 = vunpack.c.l.b16 %v1716
        %v1852 = vunpack.c.l.b16 %v1717
        %v1853 = vunpack.c.l.b16 %v1718
        %v1854 = vunpack.c.l.b16 %v1719
        %v1855 = vunpack.c.l.b16 %v1720
        %v1856 = vunpack.c.l.b16 %v1721
        %v1857 = vunpack.c.l.b16 %v1722
        %v1858 = vunpack.c.l.b16 %v1723
        %v1859 = vunpack.c.l.b16 %v1724
        %v1860 = vunpack.c.l.b16 %v1725
        %v1861 = vunpack.c.l.b16 %v1726
        %v1862 = vunpack.c.l.b16 %v1727
        %v1863 = vunpack.c.l.b16 %v1728
        %v1864 = vunpack.c.l.b16 %v1729
        %v1865 = vunpack.c.l.b16 %v1730
        %v1866 = vunpack.c.l.b16 %v1731
        %v1867 = vunpack.c.l.b16 %v1732
        %v1868 = vunpack.c.l.b16 %v1733
        %v1869 = vunpack.c.l.b16 %v1734
        %v1870 = vunpack.c.l.b16 %v1735
        %v1871 = vunpack.c.l.b16 %v1736
        %v1872 = vunpack.c.l.b16 %v1737
        %v1873 = vunpack.c.l.b16 %v1738
        %v1874 = vunpack.c.l.b16 %v1739
        %v1875 = vunpack.c.l.b16 %v1740
        %v1876 = vunpack.c.l.b16 %v1741
        %v1877 = vunpack.c.l.b16 %v1742
        %v1878 = vunpack.c.l.b16 %v1743
        %v1879 = vunpack.c.l.b16 %v1744
        %v1880 = vunpack.c.l.b16 %v1745
        %v1881 = vunpack.c.l.b16 %v1746
        %v1882 = vunpack.c.l.b16 %v1747
        %v1883 = vunpack.c.l.b16 %v1748
        %v1884 = vunpack.c.l.b16 %v1749
        %v1885 = vunpack.c.l.b16 %v1750
        %v1886 = vunpack.c.l.b16 %v1751
        %v1887 = vunpack.c.l.b16 %v1752
        %v1888 = vunpack.c.l.b16 %v1753
        %v1889 = vunpack.c.l.b16 %v1754
        %v1890 = vunpack.c.l.b16 %v1755
        %v1891 = vunpack.c.l.b16 %v1756
        %v1892 = vunpack.c.l.b16 %v1757
        %v1893 = vunpack.c.l.b16 %v1758
        %v1894 = vunpack.c.l.b16 %v1759
        %v1895 = vunpack.c.l.b16 %v1760
        %v1896 = vunpack.c.l.b16 %v1761
        %v1897 = vunpack.c.l.b16 %v1762
        %v1898 = vunpack.c.l.b16 %v1763
        %v1899 = vunpack.c.l.b16 %v1764
        %v1900 = vunpack.c.l.b16 %v1765
        %v1901 = vunpack.c.l.b16 %v1766
        %v1902 = vunpack.c.l.b16 %v1767
        %v1903 = vunpack.c.l.b16 %v1768
        %v1904 = vunpack.c.l.b16 %v1769
        %v1905 = vunpack.c.l.b16 %v1770
        %v1906 = vpack.c.b16 %v1843, %v1842
        %v1907 = vpack.c.b16 %v1845, %v1844
        %v1908 = vpack.c.b16 %v1847, %v1846
        %v1909 = vpack.c.b16 %v1849, %v1848
        %v1910 = vpack.c.b16 %v1851, %v1850
        %v1911 = vpack.c.b16 %v1853, %v1852
        %v1912 = vpack.c.b16 %v1855, %v1854
        %v1913 = vpack.c.b16 %v1857, %v1856
        %v1914 = vpack.c.b16 %v1859, %v1858
        %v1915 = vpack.c.b16 %v1861, %v1860
        %v1916 = vpack.c.b16 %v1863, %v1862
        %v1917 = vpack.c.b16 %v1865, %v1864
        %v1918 = vpack.c.b16 %v1867, %v1866
        %v1919 = vpack.c.b16 %v1869, %v1868
        %v1920 = vpack.c.b16 %v1871, %v1870
        %v1921 = vpack.c.b16 %v1873, %v1872
        %v1922 = vpack.c.b16 %v1875, %v1874
        %v1923 = vpack.c.b16 %v1877, %v1876
        %v1924 = vpack.c.b16 %v1879, %v1878
        %v1925 = vpack.c.b16 %v1881, %v1880
        %v1926 = vpack.c.b16 %v1883, %v1882
        %v1927 = vpack.c.b16 %v1885, %v1884
        %v1928 = vpack.c.b16 %v1887, %v1886
        %v1929 = vpack.c.b16 %v1889, %v1888
        %v1930 = vpack.c.b16 %v1891, %v1890
        %v1931 = vpack.c.b16 %v1893, %v1892
        %v1932 = vpack.c.b16 %v1895, %v1894
        %v1933 = vpack.c.b16 %v1897, %v1896
        %v1934 = vpack.c.b16 %v1899, %v1898
        %v1935 = vpack.c.b16 %v1901, %v1900
        %v1936 = vpack.c.b16 %v1903, %v1902
        %v1937 = vpack.c.b16 %v1905, %v1904
        %1970 = vmatprep.subr.bf16.mxu0 0
        %1971 = vmatpush1.bf16.msra.mxu0 %v1906
        %1972 = vmatprep.subr.bf16.mxu0 0
        %1973 = vmatpush1.bf16.msra.mxu0 %v1907
        %1974 = vmatprep.subr.bf16.mxu0 0
        %1975 = vmatpush1.bf16.msra.mxu0 %v1908
        %1976 = vmatprep.subr.bf16.mxu0 0
        %1977 = vmatpush1.bf16.msra.mxu0 %v1909
        %1978 = vmatprep.subr.bf16.mxu0 0
        %1979 = vmatpush1.bf16.msra.mxu0 %v1910
        %1980 = vmatprep.subr.bf16.mxu0 0
        %1981 = vmatpush1.bf16.msra.mxu0 %v1911
        %1982 = vmatprep.subr.bf16.mxu0 0
        %1983 = vmatpush1.bf16.msra.mxu0 %v1912
        %1984 = vmatprep.subr.bf16.mxu0 0
        %1985 = vmatpush1.bf16.msra.mxu0 %v1913
        %1986 = vmatprep.subr.bf16.mxu0 0
        %1987 = vmatpush1.bf16.msra.mxu0 %v1914
        %1988 = vmatprep.subr.bf16.mxu0 0
        %1989 = vmatpush1.bf16.msra.mxu0 %v1915
        %1990 = vmatprep.subr.bf16.mxu0 0
        %1991 = vmatpush1.bf16.msra.mxu0 %v1916
        %1992 = vmatprep.subr.bf16.mxu0 0
        %1993 = vmatpush1.bf16.msra.mxu0 %v1917
        %1994 = vmatprep.subr.bf16.mxu0 0
        %1995 = vmatpush1.bf16.msra.mxu0 %v1918
        %1996 = vmatprep.subr.bf16.mxu0 0
        %1997 = vmatpush1.bf16.msra.mxu0 %v1919
        %1998 = vmatprep.subr.bf16.mxu0 0
        %1999 = vmatpush1.bf16.msra.mxu0 %v1920
        %2000 = vmatprep.subr.bf16.mxu0 0
        %2001 = vmatpush1.bf16.msra.mxu0 %v1921
        %2002 = vmatprep.mubr.bf16.mxu0 %v1644
        %2003 = vmatmul.mubr.bf16.gmra.mrb[0].mxu0 %v1643
        %v2004 = vpop.f32.mrb[0].mxu0
        %v2005 = vadd.f32 %v1776, %v2004
        %v2006 = vpop.f32.mrb[0].mxu0
        %v2007 = vpop.f32.mrb[0].mxu0
        %v2008 = vadd.f32 %v1776, %v2007
        %v2009 = vpop.f32.mrb[0].mxu0
        %2010 = vmatprep.mubr.bf16.mxu0 %v1648
        %2011 = vmatmul.mubr.bf16.gmra.mrb[0].mxu0 %v1647
        %v2012 = vpop.f32.mrb[0].mxu0
        %v2013 = vadd.f32 %v1776, %v2012
        %v2014 = vpop.f32.mrb[0].mxu0
        %v2015 = vpop.f32.mrb[0].mxu0
        %v2016 = vadd.f32 %v1776, %v2015
        %v2017 = vpop.f32.mrb[0].mxu0
        %2018 = vmatprep.mubr.bf16.mxu0 %v1652
        %2019 = vmatmul.mubr.bf16.gmra.mrb[0].mxu0 %v1651
        %v2020 = vpop.f32.mrb[0].mxu0
        %v2021 = vadd.f32 %v1776, %v2020
        %v2022 = vpop.f32.mrb[0].mxu0
        %v2023 = vpop.f32.mrb[0].mxu0
        %v2024 = vadd.f32 %v1776, %v2023
        %v2025 = vpop.f32.mrb[0].mxu0
        %2026 = vmatprep.mubr.bf16.mxu0 %v1656
        %2027 = vmatmul.mubr.bf16.gmra.mrb[0].mxu0 %v1655
        %v2028 = vpop.f32.mrb[0].mxu0
        %v2029 = vadd.f32 %v1776, %v2028
        %v2030 = vpop.f32.mrb[0].mxu0
        %v2031 = vpop.f32.mrb[0].mxu0
        %v2032 = vadd.f32 %v1776, %v2031
        %v2033 = vpop.f32.mrb[0].mxu0
        %2034 = vmatprep.mubr.bf16.mxu0 %v1660
        %2035 = vmatmul.mubr.bf16.gmra.mrb[0].mxu0 %v1659
        %v2036 = vpop.f32.mrb[0].mxu0
        %v2037 = vadd.f32 %v1776, %v2036
        %v2038 = vpop.f32.mrb[0].mxu0
        %v2039 = vpop.f32.mrb[0].mxu0
        %v2040 = vadd.f32 %v1776, %v2039
        %v2041 = vpop.f32.mrb[0].mxu0
        %2042 = vmatprep.mubr.bf16.mxu0 %v1664
        %2043 = vmatmul.mubr.bf16.gmra.mrb[0].mxu0 %v1663
        %v2044 = vpop.f32.mrb[0].mxu0
        %v2045 = vadd.f32 %v1776, %v2044
        %v2046 = vpop.f32.mrb[0].mxu0
        %v2047 = vpop.f32.mrb[0].mxu0
        %v2048 = vadd.f32 %v1776, %v2047
        %v2049 = vpop.f32.mrb[0].mxu0
        %2050 = vmatprep.mubr.bf16.mxu0 %v1668
        %2051 = vmatmul.mubr.bf16.gmra.mrb[0].mxu0 %v1667
        %v2052 = vpop.f32.mrb[0].mxu0
        %v2053 = vadd.f32 %v1776, %v2052
        %v2054 = vpop.f32.mrb[0].mxu0
        %v2055 = vpop.f32.mrb[0].mxu0
        %v2056 = vadd.f32 %v1776, %v2055
        %v2057 = vpop.f32.mrb[0].mxu0
        %2058 = vmatprep.mubr.bf16.mxu0 %v1672
        %2059 = vmatmul.mubr.bf16.gmra.mrb[0].mxu0 %v1671
        %v2060 = vpop.f32.mrb[0].mxu0
        %v2061 = vadd.f32 %v1776, %v2060
        %v2062 = vpop.f32.mrb[0].mxu0
        %v2063 = vpop.f32.mrb[0].mxu0
        %v2064 = vadd.f32 %v1776, %v2063
        %v2065 = vpop.f32.mrb[0].mxu0
        %2066 = vmatprep.mubr.bf16.mxu0 %v1676
        %2067 = vmatmul.mubr.bf16.gmra.mrb[0].mxu0 %v1675
        %v2068 = vpop.f32.mrb[0].mxu0
        %v2069 = vadd.f32 %v1776, %v2068
        %v2070 = vpop.f32.mrb[0].mxu0
        %v2071 = vpop.f32.mrb[0].mxu0
        %v2072 = vadd.f32 %v1776, %v2071
        %v2073 = vpop.f32.mrb[0].mxu0
        %2074 = vmatprep.mubr.bf16.mxu0 %v1680
        %2075 = vmatmul.mubr.bf16.gmra.mrb[0].mxu0 %v1679
        %v2076 = vpop.f32.mrb[0].mxu0
        %v2077 = vadd.f32 %v1776, %v2076
        %v2078 = vpop.f32.mrb[0].mxu0
        %v2079 = vpop.f32.mrb[0].mxu0
        %v2080 = vadd.f32 %v1776, %v2079
        %v2081 = vpop.f32.mrb[0].mxu0
        %2082 = vmatprep.mubr.bf16.mxu0 %v1684
        %2083 = vmatmul.mubr.bf16.gmra.mrb[0].mxu0 %v1683
        %v2084 = vpop.f32.mrb[0].mxu0
        %v2085 = vadd.f32 %v1776, %v2084
        %v2086 = vpop.f32.mrb[0].mxu0
        %v2087 = vpop.f32.mrb[0].mxu0
        %v2088 = vadd.f32 %v1776, %v2087
        %v2089 = vpop.f32.mrb[0].mxu0
        %2090 = vmatprep.mubr.bf16.mxu0 %v1688
        %2091 = vmatmul.mubr.bf16.gmra.mrb[0].mxu0 %v1687
        %v2092 = vpop.f32.mrb[0].mxu0
        %v2093 = vadd.f32 %v1776, %v2092
        %v2094 = vpop.f32.mrb[0].mxu0
        %v2095 = vpop.f32.mrb[0].mxu0
        %v2096 = vadd.f32 %v1776, %v2095
        %v2097 = vpop.f32.mrb[0].mxu0
        %2098 = vmatprep.mubr.bf16.mxu0 %v1692
        %2099 = vmatmul.mubr.bf16.gmra.mrb[0].mxu0 %v1691
        %v2100 = vpop.f32.mrb[0].mxu0
        %v2101 = vadd.f32 %v1776, %v2100
        %v2102 = vpop.f32.mrb[0].mxu0
        %v2103 = vpop.f32.mrb[0].mxu0
        %v2104 = vadd.f32 %v1776, %v2103
        %v2105 = vpop.f32.mrb[0].mxu0
        %2106 = vmatprep.mubr.bf16.mxu0 %v1696
        %2107 = vmatmul.mubr.bf16.gmra.mrb[0].mxu0 %v1695
        %v2108 = vpop.f32.mrb[0].mxu0
        %v2109 = vadd.f32 %v1776, %v2108
        %v2110 = vpop.f32.mrb[0].mxu0
        %v2111 = vpop.f32.mrb[0].mxu0
        %v2112 = vadd.f32 %v1776, %v2111
        %v2113 = vpop.f32.mrb[0].mxu0
        %2114 = vmatprep.mubr.bf16.mxu0 %v1700
        %2115 = vmatmul.mubr.bf16.gmra.mrb[0].mxu0 %v1699
        %v2116 = vpop.f32.mrb[0].mxu0
        %v2117 = vadd.f32 %v1776, %v2116
        %v2118 = vpop.f32.mrb[0].mxu0
        %v2119 = vpop.f32.mrb[0].mxu0
        %v2120 = vadd.f32 %v1776, %v2119
        %v2121 = vpop.f32.mrb[0].mxu0
        %2122 = vmatprep.mubr.bf16.mxu0 %v1704
        %2123 = vmatmul.mubr.bf16.gmra.mrb[0].mxu0 %v1703
        %v2124 = vpop.f32.mrb[0].mxu0
        %v2125 = vadd.f32 %v1776, %v2124
        %v2126 = vpop.f32.mrb[0].mxu0
        %v2127 = vpop.f32.mrb[0].mxu0
        %v2128 = vadd.f32 %v1776, %v2127
        %v2129 = vpop.f32.mrb[0].mxu0
        %2130 = vdwg.mxu0
        %2131 = vmatprep.subr.bf16.mxu0 0
        %2132 = vmatpush1.bf16.msra.mxu0 %v1922
        %2133 = vmatprep.subr.bf16.mxu0 0
        %2134 = vmatpush1.bf16.msra.mxu0 %v1923
        %2135 = vmatprep.subr.bf16.mxu0 0
        %2136 = vmatpush1.bf16.msra.mxu0 %v1924
        %2137 = vmatprep.subr.bf16.mxu0 0
        %2138 = vmatpush1.bf16.msra.mxu0 %v1925
        %2139 = vmatprep.subr.bf16.mxu0 0
        %2140 = vmatpush1.bf16.msra.mxu0 %v1926
        %2141 = vmatprep.subr.bf16.mxu0 0
        %2142 = vmatpush1.bf16.msra.mxu0 %v1927
        %2143 = vmatprep.subr.bf16.mxu0 0
        %2144 = vmatpush1.bf16.msra.mxu0 %v1928
        %2145 = vmatprep.subr.bf16.mxu0 0
        %2146 = vmatpush1.bf16.msra.mxu0 %v1929
        %2147 = vmatprep.subr.bf16.mxu0 0
        %2148 = vmatpush1.bf16.msra.mxu0 %v1930
        %2149 = vmatprep.subr.bf16.mxu0 0
        %2150 = vmatpush1.bf16.msra.mxu0 %v1931
        %2151 = vmatprep.subr.bf16.mxu0 0
        %2152 = vmatpush1.bf16.msra.mxu0 %v1932
        %2153 = vmatprep.subr.bf16.mxu0 0
        %2154 = vmatpush1.bf16.msra.mxu0 %v1933
        %2155 = vmatprep.subr.bf16.mxu0 0
        %2156 = vmatpush1.bf16.msra.mxu0 %v1934
        %2157 = vmatprep.subr.bf16.mxu0 0
        %2158 = vmatpush1.bf16.msra.mxu0 %v1935
        %2159 = vmatprep.subr.bf16.mxu0 0
        %2160 = vmatpush1.bf16.msra.mxu0 %v1936
        %2161 = vmatprep.subr.bf16.mxu0 0
        %2162 = vmatpush1.bf16.msra.mxu0 %v1937
        %2163 = vmatprep.mubr.bf16.mxu0 %v1646
        %2164 = vmatmul.mubr.bf16.gmra.mrb[0].mxu0 %v1645
        %v2165 = vpop.f32.mrb[0].mxu0
        %v2166 = vadd.f32 %v2005, %v2165
        %v2167 = vpop.f32.mrb[0].mxu0
        %v2168 = vpop.f32.mrb[0].mxu0
        %v2169 = vadd.f32 %v2008, %v2168
        %v2170 = vpop.f32.mrb[0].mxu0
        %2171 = vmatprep.mubr.bf16.mxu0 %v1650
        %2172 = vmatmul.mubr.bf16.gmra.mrb[0].mxu0 %v1649
        %v2173 = vpop.f32.mrb[0].mxu0
        %v2174 = vadd.f32 %v2013, %v2173
        %v2175 = vpop.f32.mrb[0].mxu0
        %v2176 = vpop.f32.mrb[0].mxu0
        %v2177 = vadd.f32 %v2016, %v2176
        %v2178 = vpop.f32.mrb[0].mxu0
        %2179 = vmatprep.mubr.bf16.mxu0 %v1654
        %2180 = vmatmul.mubr.bf16.gmra.mrb[0].mxu0 %v1653
        %v2181 = vpop.f32.mrb[0].mxu0
        %v2182 = vadd.f32 %v2021, %v2181
        %v2183 = vpop.f32.mrb[0].mxu0
        %v2184 = vpop.f32.mrb[0].mxu0
        %v2185 = vadd.f32 %v2024, %v2184
        %v2186 = vpop.f32.mrb[0].mxu0
        %2187 = vmatprep.mubr.bf16.mxu0 %v1658
        %2188 = vmatmul.mubr.bf16.gmra.mrb[0].mxu0 %v1657
        %v2189 = vpop.f32.mrb[0].mxu0
        %v2190 = vadd.f32 %v2029, %v2189
        %v2191 = vpop.f32.mrb[0].mxu0
        %v2192 = vpop.f32.mrb[0].mxu0
        %v2193 = vadd.f32 %v2032, %v2192
        %v2194 = vpop.f32.mrb[0].mxu0
        %2195 = vmatprep.mubr.bf16.mxu0 %v1662
        %2196 = vmatmul.mubr.bf16.gmra.mrb[0].mxu0 %v1661
        %v2197 = vpop.f32.mrb[0].mxu0
        %v2198 = vadd.f32 %v2037, %v2197
        %v2199 = vpop.f32.mrb[0].mxu0
        %v2200 = vpop.f32.mrb[0].mxu0
        %v2201 = vadd.f32 %v2040, %v2200
        %v2202 = vpop.f32.mrb[0].mxu0
        %2203 = vmatprep.mubr.bf16.mxu0 %v1666
        %2204 = vmatmul.mubr.bf16.gmra.mrb[0].mxu0 %v1665
        %v2205 = vpop.f32.mrb[0].mxu0
        %v2206 = vadd.f32 %v2045, %v2205
        %v2207 = vpop.f32.mrb[0].mxu0
        %v2208 = vpop.f32.mrb[0].mxu0
        %v2209 = vadd.f32 %v2048, %v2208
        %v2210 = vpop.f32.mrb[0].mxu0
        %2211 = vmatprep.mubr.bf16.mxu0 %v1670
        %2212 = vmatmul.mubr.bf16.gmra.mrb[0].mxu0 %v1669
        %v2213 = vpop.f32.mrb[0].mxu0
        %v2214 = vadd.f32 %v2053, %v2213
        %v2215 = vpop.f32.mrb[0].mxu0
        %v2216 = vpop.f32.mrb[0].mxu0
        %v2217 = vadd.f32 %v2056, %v2216
        %v2218 = vpop.f32.mrb[0].mxu0
        %2219 = vmatprep.mubr.bf16.mxu0 %v1674
        %2220 = vmatmul.mubr.bf16.gmra.mrb[0].mxu0 %v1673
        %v2221 = vpop.f32.mrb[0].mxu0
        %v2222 = vadd.f32 %v2061, %v2221
        %v2223 = vpop.f32.mrb[0].mxu0
        %v2224 = vpop.f32.mrb[0].mxu0
        %v2225 = vadd.f32 %v2064, %v2224
        %v2226 = vpop.f32.mrb[0].mxu0
        %2227 = vmatprep.mubr.bf16.mxu0 %v1678
        %2228 = vmatmul.mubr.bf16.gmra.mrb[0].mxu0 %v1677
        %v2229 = vpop.f32.mrb[0].mxu0
        %v2230 = vadd.f32 %v2069, %v2229
        %v2231 = vpop.f32.mrb[0].mxu0
        %v2232 = vpop.f32.mrb[0].mxu0
        %v2233 = vadd.f32 %v2072, %v2232
        %v2234 = vpop.f32.mrb[0].mxu0
        %2235 = vmatprep.mubr.bf16.mxu0 %v1682
        %2236 = vmatmul.mubr.bf16.gmra.mrb[0].mxu0 %v1681
        %v2237 = vpop.f32.mrb[0].mxu0
        %v2238 = vadd.f32 %v2077, %v2237
        %v2239 = vpop.f32.mrb[0].mxu0
        %v2240 = vpop.f32.mrb[0].mxu0
        %v2241 = vadd.f32 %v2080, %v2240
        %v2242 = vpop.f32.mrb[0].mxu0
        %2243 = vmatprep.mubr.bf16.mxu0 %v1686
        %2244 = vmatmul.mubr.bf16.gmra.mrb[0].mxu0 %v1685
        %v2245 = vpop.f32.mrb[0].mxu0
        %v2246 = vadd.f32 %v2085, %v2245
        %v2247 = vpop.f32.mrb[0].mxu0
        %v2248 = vpop.f32.mrb[0].mxu0
        %v2249 = vadd.f32 %v2088, %v2248
        %v2250 = vpop.f32.mrb[0].mxu0
        %2251 = vmatprep.mubr.bf16.mxu0 %v1690
        %2252 = vmatmul.mubr.bf16.gmra.mrb[0].mxu0 %v1689
        %v2253 = vpop.f32.mrb[0].mxu0
        %v2254 = vadd.f32 %v2093, %v2253
        %v2255 = vpop.f32.mrb[0].mxu0
        %v2256 = vpop.f32.mrb[0].mxu0
        %v2257 = vadd.f32 %v2096, %v2256
        %v2258 = vpop.f32.mrb[0].mxu0
        %2259 = vmatprep.mubr.bf16.mxu0 %v1694
        %2260 = vmatmul.mubr.bf16.gmra.mrb[0].mxu0 %v1693
        %v2261 = vpop.f32.mrb[0].mxu0
        %v2262 = vadd.f32 %v2101, %v2261
        %v2263 = vpop.f32.mrb[0].mxu0
        %v2264 = vpop.f32.mrb[0].mxu0
        %v2265 = vadd.f32 %v2104, %v2264
        %v2266 = vpop.f32.mrb[0].mxu0
        %2267 = vmatprep.mubr.bf16.mxu0 %v1698
        %2268 = vmatmul.mubr.bf16.gmra.mrb[0].mxu0 %v1697
        %v2269 = vpop.f32.mrb[0].mxu0
        %v2270 = vadd.f32 %v2109, %v2269
        %v2271 = vpop.f32.mrb[0].mxu0
        %v2272 = vpop.f32.mrb[0].mxu0
        %v2273 = vadd.f32 %v2112, %v2272
        %v2274 = vpop.f32.mrb[0].mxu0
        %2275 = vmatprep.mubr.bf16.mxu0 %v1702
        %2276 = vmatmul.mubr.bf16.gmra.mrb[0].mxu0 %v1701
        %v2277 = vpop.f32.mrb[0].mxu0
        %v2278 = vadd.f32 %v2117, %v2277
        %v2279 = vpop.f32.mrb[0].mxu0
        %v2280 = vpop.f32.mrb[0].mxu0
        %v2281 = vadd.f32 %v2120, %v2280
        %v2282 = vpop.f32.mrb[0].mxu0
        %2283 = vmatprep.mubr.bf16.mxu0 %v1706
        %2284 = vmatmul.mubr.bf16.gmra.mrb[0].mxu0 %v1705
        %v2285 = vpop.f32.mrb[0].mxu0
        %v2286 = vadd.f32 %v2125, %v2285
        %v2287 = vpop.f32.mrb[0].mxu0
        %v2288 = vpop.f32.mrb[0].mxu0
        %v2289 = vadd.f32 %v2128, %v2288
        %v2290 = vpop.f32.mrb[0].mxu0
        %2291 = vdwg.mxu0
        %2292 = vmax.xlane.f32.xlu0 %v2166
        %v2293 = vpop.xlane.xlu0 %2292
        %2294 = vmax.xlane.f32.xlu0 %v2169
        %v2295 = vpop.xlane.xlu0 %2294
        %2296 = vmax.xlane.f32.xlu0 %v2174
        %v2297 = vpop.xlane.xlu0 %2296
        %2298 = vmax.xlane.f32.xlu0 %v2177
        %v2299 = vpop.xlane.xlu0 %2298
        %2300 = vmax.xlane.f32.xlu0 %v2182
        %v2301 = vpop.xlane.xlu0 %2300
        %2302 = vmax.xlane.f32.xlu0 %v2185
        %v2303 = vpop.xlane.xlu0 %2302
        %2304 = vmax.xlane.f32.xlu0 %v2190
        %v2305 = vpop.xlane.xlu0 %2304
        %2306 = vmax.xlane.f32.xlu0 %v2193
        %v2307 = vpop.xlane.xlu0 %2306
        %2308 = vmax.xlane.f32.xlu0 %v2198
        %v2309 = vpop.xlane.xlu0 %2308
        %2310 = vmax.xlane.f32.xlu0 %v2201
        %v2311 = vpop.xlane.xlu0 %2310
        %2312 = vmax.xlane.f32.xlu0 %v2206
        %v2313 = vpop.xlane.xlu0 %2312
        %2314 = vmax.xlane.f32.xlu0 %v2209
        %v2315 = vpop.xlane.xlu0 %2314
        %2316 = vmax.xlane.f32.xlu0 %v2214
        %v2317 = vpop.xlane.xlu0 %2316
        %2318 = vmax.xlane.f32.xlu0 %v2217
        %v2319 = vpop.xlane.xlu0 %2318
        %2320 = vmax.xlane.f32.xlu0 %v2222
        %v2321 = vpop.xlane.xlu0 %2320
        %2322 = vmax.xlane.f32.xlu0 %v2225
        %v2323 = vpop.xlane.xlu0 %2322
        %2324 = vmax.xlane.f32.xlu0 %v2230
        %v2325 = vpop.xlane.xlu0 %2324
        %2326 = vmax.xlane.f32.xlu0 %v2233
        %v2327 = vpop.xlane.xlu0 %2326
        %2328 = vmax.xlane.f32.xlu0 %v2238
        %v2329 = vpop.xlane.xlu0 %2328
        %2330 = vmax.xlane.f32.xlu0 %v2241
        %v2331 = vpop.xlane.xlu0 %2330
        %2332 = vmax.xlane.f32.xlu0 %v2246
        %v2333 = vpop.xlane.xlu0 %2332
        %2334 = vmax.xlane.f32.xlu0 %v2249
        %v2335 = vpop.xlane.xlu0 %2334
        %2336 = vmax.xlane.f32.xlu0 %v2254
        %v2337 = vpop.xlane.xlu0 %2336
        %2338 = vmax.xlane.f32.xlu0 %v2257
        %v2339 = vpop.xlane.xlu0 %2338
        %2340 = vmax.xlane.f32.xlu0 %v2262
        %v2341 = vpop.xlane.xlu0 %2340
        %2342 = vmax.xlane.f32.xlu0 %v2265
        %v2343 = vpop.xlane.xlu0 %2342
        %2344 = vmax.xlane.f32.xlu0 %v2270
        %v2345 = vpop.xlane.xlu0 %2344
        %2346 = vmax.xlane.f32.xlu0 %v2273
        %v2347 = vpop.xlane.xlu0 %2346
        %2348 = vmax.xlane.f32.xlu0 %v2278
        %v2349 = vpop.xlane.xlu0 %2348
        %2350 = vmax.xlane.f32.xlu0 %v2281
        %v2351 = vpop.xlane.xlu0 %2350
        %2352 = vmax.xlane.f32.xlu0 %v2286
        %v2353 = vpop.xlane.xlu0 %2352
        %2354 = vmax.xlane.f32.xlu0 %v2289
        %v2355 = vpop.xlane.xlu0 %2354
        %v2356 = vsub.f32 %v2166, %v2293
        %v2357 = vsub.f32 %v2169, %v2295
        %v2358 = vsub.f32 %v2174, %v2297
        %v2359 = vsub.f32 %v2177, %v2299
        %v2360 = vsub.f32 %v2182, %v2301
        %v2361 = vsub.f32 %v2185, %v2303
        %v2362 = vsub.f32 %v2190, %v2305
        %v2363 = vsub.f32 %v2193, %v2307
        %v2364 = vsub.f32 %v2198, %v2309
        %v2365 = vsub.f32 %v2201, %v2311
        %v2366 = vsub.f32 %v2206, %v2313
        %v2367 = vsub.f32 %v2209, %v2315
        %v2368 = vsub.f32 %v2214, %v2317
        %v2369 = vsub.f32 %v2217, %v2319
        %v2370 = vsub.f32 %v2222, %v2321
        %v2371 = vsub.f32 %v2225, %v2323
        %v2372 = vsub.f32 %v2230, %v2325
        %v2373 = vsub.f32 %v2233, %v2327
        %v2374 = vsub.f32 %v2238, %v2329
        %v2375 = vsub.f32 %v2241, %v2331
        %v2376 = vsub.f32 %v2246, %v2333
        %v2377 = vsub.f32 %v2249, %v2335
        %v2378 = vsub.f32 %v2254, %v2337
        %v2379 = vsub.f32 %v2257, %v2339
        %v2380 = vsub.f32 %v2262, %v2341
        %v2381 = vsub.f32 %v2265, %v2343
        %v2382 = vsub.f32 %v2270, %v2345
        %v2383 = vsub.f32 %v2273, %v2347
        %v2384 = vsub.f32 %v2278, %v2349
        %v2385 = vsub.f32 %v2281, %v2351
        %v2386 = vsub.f32 %v2286, %v2353
        %v2387 = vsub.f32 %v2289, %v2355
        %v2388 = vmul.f32 %v2356, 1.442695
        %v2389 = vpow.pop %v2388
        %v2390 = vmul.f32 %v2357, 1.442695
        %v2391 = vpow.pop %v2390
        %v2392 = vmul.f32 %v2358, 1.442695
        %v2393 = vpow.pop %v2392
        %v2394 = vmul.f32 %v2359, 1.442695
        %v2395 = vpow.pop %v2394
        %v2396 = vmul.f32 %v2360, 1.442695
        %v2397 = vpow.pop %v2396
        %v2398 = vmul.f32 %v2361, 1.442695
        %v2399 = vpow.pop %v2398
        %v2400 = vmul.f32 %v2362, 1.442695
        %v2401 = vpow.pop %v2400
        %v2402 = vmul.f32 %v2363, 1.442695
        %v2403 = vpow.pop %v2402
        %v2404 = vmul.f32 %v2364, 1.442695
        %v2405 = vpow.pop %v2404
        %v2406 = vmul.f32 %v2365, 1.442695
        %v2407 = vpow.pop %v2406
        %v2408 = vmul.f32 %v2366, 1.442695
        %v2409 = vpow.pop %v2408
        %v2410 = vmul.f32 %v2367, 1.442695
        %v2411 = vpow.pop %v2410
        %v2412 = vmul.f32 %v2368, 1.442695
        %v2413 = vpow.pop %v2412
        %v2414 = vmul.f32 %v2369, 1.442695
        %v2415 = vpow.pop %v2414
        %v2416 = vmul.f32 %v2370, 1.442695
        %v2417 = vpow.pop %v2416
        %v2418 = vmul.f32 %v2371, 1.442695
        %v2419 = vpow.pop %v2418
        %v2420 = vmul.f32 %v2372, 1.442695
        %v2421 = vpow.pop %v2420
        %v2422 = vmul.f32 %v2373, 1.442695
        %v2423 = vpow.pop %v2422
        %v2424 = vmul.f32 %v2374, 1.442695
        %v2425 = vpow.pop %v2424
        %v2426 = vmul.f32 %v2375, 1.442695
        %v2427 = vpow.pop %v2426
        %v2428 = vmul.f32 %v2376, 1.442695
        %v2429 = vpow.pop %v2428
        %v2430 = vmul.f32 %v2377, 1.442695
        %v2431 = vpow.pop %v2430
        %v2432 = vmul.f32 %v2378, 1.442695
        %v2433 = vpow.pop %v2432
        %v2434 = vmul.f32 %v2379, 1.442695
        %v2435 = vpow.pop %v2434
        %v2436 = vmul.f32 %v2380, 1.442695
        %v2437 = vpow.pop %v2436
        %v2438 = vmul.f32 %v2381, 1.442695
        %v2439 = vpow.pop %v2438
        %v2440 = vmul.f32 %v2382, 1.442695
        %v2441 = vpow.pop %v2440
        %v2442 = vmul.f32 %v2383, 1.442695
        %v2443 = vpow.pop %v2442
        %v2444 = vmul.f32 %v2384, 1.442695
        %v2445 = vpow.pop %v2444
        %v2446 = vmul.f32 %v2385, 1.442695
        %v2447 = vpow.pop %v2446
        %v2448 = vmul.f32 %v2386, 1.442695
        %v2449 = vpow.pop %v2448
        %v2450 = vmul.f32 %v2387, 1.442695
        %v2451 = vpow.pop %v2450
        %2452 = vadd.xlane.f32.xlu0 %v2389
        %v2453 = vpop.xlane.xlu0 %2452
        %2454 = vadd.xlane.f32.xlu0 %v2391
        %v2455 = vpop.xlane.xlu0 %2454
        %2456 = vadd.xlane.f32.xlu0 %v2393
        %v2457 = vpop.xlane.xlu0 %2456
        %2458 = vadd.xlane.f32.xlu0 %v2395
        %v2459 = vpop.xlane.xlu0 %2458
        %2460 = vadd.xlane.f32.xlu0 %v2397
        %v2461 = vpop.xlane.xlu0 %2460
        %2462 = vadd.xlane.f32.xlu0 %v2399
        %v2463 = vpop.xlane.xlu0 %2462
        %2464 = vadd.xlane.f32.xlu0 %v2401
        %v2465 = vpop.xlane.xlu0 %2464
        %2466 = vadd.xlane.f32.xlu0 %v2403
        %v2467 = vpop.xlane.xlu0 %2466
        %2468 = vadd.xlane.f32.xlu0 %v2405
        %v2469 = vpop.xlane.xlu0 %2468
        %2470 = vadd.xlane.f32.xlu0 %v2407
        %v2471 = vpop.xlane.xlu0 %2470
        %2472 = vadd.xlane.f32.xlu0 %v2409
        %v2473 = vpop.xlane.xlu0 %2472
        %2474 = vadd.xlane.f32.xlu0 %v2411
        %v2475 = vpop.xlane.xlu0 %2474
        %2476 = vadd.xlane.f32.xlu0 %v2413
        %v2477 = vpop.xlane.xlu0 %2476
        %2478 = vadd.xlane.f32.xlu0 %v2415
        %v2479 = vpop.xlane.xlu0 %2478
        %2480 = vadd.xlane.f32.xlu0 %v2417
        %v2481 = vpop.xlane.xlu0 %2480
        %2482 = vadd.xlane.f32.xlu0 %v2419
        %v2483 = vpop.xlane.xlu0 %2482
        %2484 = vadd.xlane.f32.xlu0 %v2421
        %v2485 = vpop.xlane.xlu0 %2484
        %2486 = vadd.xlane.f32.xlu0 %v2423
        %v2487 = vpop.xlane.xlu0 %2486
        %2488 = vadd.xlane.f32.xlu0 %v2425
        %v2489 = vpop.xlane.xlu0 %2488
        %2490 = vadd.xlane.f32.xlu0 %v2427
        %v2491 = vpop.xlane.xlu0 %2490
        %2492 = vadd.xlane.f32.xlu0 %v2429
        %v2493 = vpop.xlane.xlu0 %2492
        %2494 = vadd.xlane.f32.xlu0 %v2431
        %v2495 = vpop.xlane.xlu0 %2494
        %2496 = vadd.xlane.f32.xlu0 %v2433
        %v2497 = vpop.xlane.xlu0 %2496
        %2498 = vadd.xlane.f32.xlu0 %v2435
        %v2499 = vpop.xlane.xlu0 %2498
        %2500 = vadd.xlane.f32.xlu0 %v2437
        %v2501 = vpop.xlane.xlu0 %2500
        %2502 = vadd.xlane.f32.xlu0 %v2439
        %v2503 = vpop.xlane.xlu0 %2502
        %2504 = vadd.xlane.f32.xlu0 %v2441
        %v2505 = vpop.xlane.xlu0 %2504
        %2506 = vadd.xlane.f32.xlu0 %v2443
        %v2507 = vpop.xlane.xlu0 %2506
        %2508 = vadd.xlane.f32.xlu0 %v2445
        %v2509 = vpop.xlane.xlu0 %2508
        %2510 = vadd.xlane.f32.xlu0 %v2447
        %v2511 = vpop.xlane.xlu0 %2510
        %2512 = vadd.xlane.f32.xlu0 %v2449
        %v2513 = vpop.xlane.xlu0 %2512
        %2514 = vadd.xlane.f32.xlu0 %v2451
        %v2515 = vpop.xlane.xlu0 %2514
        %v2516 = vrcp.pop %v2453
        %v2517 = vrcp.pop %v2455
        %v2518 = vrcp.pop %v2457
        %v2519 = vrcp.pop %v2459
        %v2520 = vrcp.pop %v2461
        %v2521 = vrcp.pop %v2463
        %v2522 = vrcp.pop %v2465
        %v2523 = vrcp.pop %v2467
        %v2524 = vrcp.pop %v2469
        %v2525 = vrcp.pop %v2471
        %v2526 = vrcp.pop %v2473
        %v2527 = vrcp.pop %v2475
        %v2528 = vrcp.pop %v2477
        %v2529 = vrcp.pop %v2479
        %v2530 = vrcp.pop %v2481
        %v2531 = vrcp.pop %v2483
        %v2532 = vrcp.pop %v2485
        %v2533 = vrcp.pop %v2487
        %v2534 = vrcp.pop %v2489
        %v2535 = vrcp.pop %v2491
        %v2536 = vrcp.pop %v2493
        %v2537 = vrcp.pop %v2495
        %v2538 = vrcp.pop %v2497
        %v2539 = vrcp.pop %v2499
        %v2540 = vrcp.pop %v2501
        %v2541 = vrcp.pop %v2503
        %v2542 = vrcp.pop %v2505
        %v2543 = vrcp.pop %v2507
        %v2544 = vrcp.pop %v2509
        %v2545 = vrcp.pop %v2511
        %v2546 = vrcp.pop %v2513
        %v2547 = vrcp.pop %v2515
        %v2548 = vmul.f32 %v2389, %v2516
        %v2549 = vmul.f32 %v2391, %v2517
        %v2550 = vmul.f32 %v2393, %v2518
        %v2551 = vmul.f32 %v2395, %v2519
        %v2552 = vmul.f32 %v2397, %v2520
        %v2553 = vmul.f32 %v2399, %v2521
        %v2554 = vmul.f32 %v2401, %v2522
        %v2555 = vmul.f32 %v2403, %v2523
        %v2556 = vmul.f32 %v2405, %v2524
        %v2557 = vmul.f32 %v2407, %v2525
        %v2558 = vmul.f32 %v2409, %v2526
        %v2559 = vmul.f32 %v2411, %v2527
        %v2560 = vmul.f32 %v2413, %v2528
        %v2561 = vmul.f32 %v2415, %v2529
        %v2562 = vmul.f32 %v2417, %v2530
        %v2563 = vmul.f32 %v2419, %v2531
        %v2564 = vmul.f32 %v2421, %v2532
        %v2565 = vmul.f32 %v2423, %v2533
        %v2566 = vmul.f32 %v2425, %v2534
        %v2567 = vmul.f32 %v2427, %v2535
        %v2568 = vmul.f32 %v2429, %v2536
        %v2569 = vmul.f32 %v2431, %v2537
        %v2570 = vmul.f32 %v2433, %v2538
        %v2571 = vmul.f32 %v2435, %v2539
        %v2572 = vmul.f32 %v2437, %v2540
        %v2573 = vmul.f32 %v2439, %v2541
        %v2574 = vmul.f32 %v2441, %v2542
        %v2575 = vmul.f32 %v2443, %v2543
        %v2576 = vmul.f32 %v2445, %v2544
        %v2577 = vmul.f32 %v2447, %v2545
        %v2578 = vmul.f32 %v2449, %v2546
        %v2579 = vmul.f32 %v2451, %v2547
        %v2580 = vpack.c.bf16 %v2549, %v2548
        %v2581 = vpack.c.bf16 %v2551, %v2550
        %v2582 = vpack.c.bf16 %v2553, %v2552
        %v2583 = vpack.c.bf16 %v2555, %v2554
        %v2584 = vpack.c.bf16 %v2557, %v2556
        %v2585 = vpack.c.bf16 %v2559, %v2558
        %v2586 = vpack.c.bf16 %v2561, %v2560
        %v2587 = vpack.c.bf16 %v2563, %v2562
        %v2588 = vpack.c.bf16 %v2565, %v2564
        %v2589 = vpack.c.bf16 %v2567, %v2566
        %v2590 = vpack.c.bf16 %v2569, %v2568
        %v2591 = vpack.c.bf16 %v2571, %v2570
        %v2592 = vpack.c.bf16 %v2573, %v2572
        %v2593 = vpack.c.bf16 %v2575, %v2574
        %v2594 = vpack.c.bf16 %v2577, %v2576
        %v2595 = vpack.c.bf16 %v2579, %v2578
        %v2612 = vunpack.c.l.b16 %v2580
        %v2613 = vunpack.c.h.b16 %v2580
        %v2614 = vunpack.c.l.b16 %v2581
        %v2615 = vunpack.c.h.b16 %v2581
        %v2616 = vunpack.c.l.b16 %v2582
        %v2617 = vunpack.c.h.b16 %v2582
        %v2618 = vunpack.c.l.b16 %v2583
        %v2619 = vunpack.c.h.b16 %v2583
        %v2620 = vunpack.c.l.b16 %v2584
        %v2621 = vunpack.c.h.b16 %v2584
        %v2622 = vunpack.c.l.b16 %v2585
        %v2623 = vunpack.c.h.b16 %v2585
        %v2624 = vunpack.c.l.b16 %v2586
        %v2625 = vunpack.c.h.b16 %v2586
        %v2626 = vunpack.c.l.b16 %v2587
        %v2627 = vunpack.c.h.b16 %v2587
        %v2628 = vunpack.c.l.b16 %v2588
        %v2629 = vunpack.c.h.b16 %v2588
        %v2630 = vunpack.c.l.b16 %v2589
        %v2631 = vunpack.c.h.b16 %v2589
        %v2632 = vunpack.c.l.b16 %v2590
        %v2633 = vunpack.c.h.b16 %v2590
        %v2634 = vunpack.c.l.b16 %v2591
        %v2635 = vunpack.c.h.b16 %v2591
        %v2636 = vunpack.c.l.b16 %v2592
        %v2637 = vunpack.c.h.b16 %v2592
        %v2638 = vunpack.c.l.b16 %v2593
        %v2639 = vunpack.c.h.b16 %v2593
        %v2640 = vunpack.c.l.b16 %v2594
        %v2641 = vunpack.c.h.b16 %v2594
        %v2642 = vunpack.c.l.b16 %v2595
        %v2643 = vunpack.c.h.b16 %v2595
        %v2644 = vpack.c.b16 %v2612, %v2612
        %v2645 = vpack.c.b16 %v2613, %v2613
        %v2646 = vpack.c.b16 %v2614, %v2614
        %v2647 = vpack.c.b16 %v2615, %v2615
        %v2648 = vpack.c.b16 %v2616, %v2616
        %v2649 = vpack.c.b16 %v2617, %v2617
        %v2650 = vpack.c.b16 %v2618, %v2618
        %v2651 = vpack.c.b16 %v2619, %v2619
        %v2652 = vpack.c.b16 %v2620, %v2620
        %v2653 = vpack.c.b16 %v2621, %v2621
        %v2654 = vpack.c.b16 %v2622, %v2622
        %v2655 = vpack.c.b16 %v2623, %v2623
        %v2656 = vpack.c.b16 %v2624, %v2624
        %v2657 = vpack.c.b16 %v2625, %v2625
        %v2658 = vpack.c.b16 %v2626, %v2626
        %v2659 = vpack.c.b16 %v2627, %v2627
        %v2660 = vpack.c.b16 %v2628, %v2628
        %v2661 = vpack.c.b16 %v2629, %v2629
        %v2662 = vpack.c.b16 %v2630, %v2630
        %v2663 = vpack.c.b16 %v2631, %v2631
        %v2664 = vpack.c.b16 %v2632, %v2632
        %v2665 = vpack.c.b16 %v2633, %v2633
        %v2666 = vpack.c.b16 %v2634, %v2634
        %v2667 = vpack.c.b16 %v2635, %v2635
        %v2668 = vpack.c.b16 %v2636, %v2636
        %v2669 = vpack.c.b16 %v2637, %v2637
        %v2670 = vpack.c.b16 %v2638, %v2638
        %v2671 = vpack.c.b16 %v2639, %v2639
        %v2672 = vpack.c.b16 %v2640, %v2640
        %v2673 = vpack.c.b16 %v2641, %v2641
        %v2674 = vpack.c.b16 %v2642, %v2642
        %v2675 = vpack.c.b16 %v2643, %v2643
        %2708 = vst [vmem:[%s287] sm:$0xf] %v2644
        %2709 = vst [vmem:[%s287 + $0x4] sm:$0xf] %v2645
        %2710 = vst [vmem:[%s287 + $0x8] sm:$0xf] %v2646
        %2711 = vst [vmem:[%s287 + $0xc] sm:$0xf] %v2647
        %2712 = vst [vmem:[%s287 + $0x10] sm:$0xf] %v2648
        %2713 = vst [vmem:[%s287 + $0x14] sm:$0xf] %v2649
        %2714 = vst [vmem:[%s287 + $0x18] sm:$0xf] %v2650
        %2715 = vst [vmem:[%s287 + $0x1c] sm:$0xf] %v2651
        %2716 = vst [vmem:[%s287 + $0x20] sm:$0xf] %v2652
        %2717 = vst [vmem:[%s287 + $0x24] sm:$0xf] %v2653
        %2718 = vst [vmem:[%s287 + $0x28] sm:$0xf] %v2654
        %2719 = vst [vmem:[%s287 + $0x2c] sm:$0xf] %v2655
        %2720 = vst [vmem:[%s287 + $0x30] sm:$0xf] %v2656
        %2721 = vst [vmem:[%s287 + $0x34] sm:$0xf] %v2657
        %2722 = vst [vmem:[%s287 + $0x38] sm:$0xf] %v2658
        %2723 = vst [vmem:[%s287 + $0x3c] sm:$0xf] %v2659
        %2724 = vst [vmem:[%s287 + $0x40] sm:$0xf] %v2660
        %2725 = vst [vmem:[%s287 + $0x44] sm:$0xf] %v2661
        %2726 = vst [vmem:[%s287 + $0x48] sm:$0xf] %v2662
        %2727 = vst [vmem:[%s287 + $0x4c] sm:$0xf] %v2663
        %2728 = vst [vmem:[%s287 + $0x50] sm:$0xf] %v2664
        %2729 = vst [vmem:[%s287 + $0x54] sm:$0xf] %v2665
        %2730 = vst [vmem:[%s287 + $0x58] sm:$0xf] %v2666
        %2731 = vst [vmem:[%s287 + $0x5c] sm:$0xf] %v2667
        %2732 = vst [vmem:[%s287 + $0x60] sm:$0xf] %v2668
        %2733 = vst [vmem:[%s287 + $0x64] sm:$0xf] %v2669
        %2734 = vst [vmem:[%s287 + $0x68] sm:$0xf] %v2670
        %2735 = vst [vmem:[%s287 + $0x6c] sm:$0xf] %v2671
        %2736 = vst [vmem:[%s287 + $0x70] sm:$0xf] %v2672
        %2737 = vst [vmem:[%s287 + $0x74] sm:$0xf] %v2673
        %2738 = vst [vmem:[%s287 + $0x78] sm:$0xf] %v2674
        %2739 = vst [vmem:[%s287 + $0x7c] sm:$0xf] %v2675
        %s2740 = sand.u32 %s182, 1
        %s2741 = scalar_lea.sflag [#allocation4], %s2740
        %s2742 = sand.u32 %s182, 1
        %s2743 = smul.addr %s2742, 128
        %s2744 = scalar_lea.vmem [#allocation5], %s2743
        // Predicated region
        $region53: #{tpu_custom_call.1} parent=47 // pred_check
          %p2745 = pneg %p192
        $region54: #{tpu_custom_call.1} parent=47 // pred_check_branch
          %2747 = sbr.rel (%p2745) target = $region56
        $region55: #{tpu_custom_call.1} parent=47 // pred_region
          %s2748 = smul.u32 32, %s22
          %s2750 = ssub.s32 2048, 2048
          %2751 = vsyncadd %s2741, %s2750
          %s2752 = smul.addr %s2748, 64
          %s2753 = scalar_lea.hbm %s7, %s2752
          %s2754 = sshll.u32 %s2744, 4
          %s2755 = int_to_ptr.vmem [resolvable:$true] %s2754
          %2760 = dma.vmem_to_hbm [thread:$0]  %s2755, 2048, %s2753, %s2741, 64, 64, 4
        $region56: #{tpu_custom_call.1} parent=47 // pred_fallthru
          _
      $region48: #{tpu_custom_call.1} parent=5 // pred_fallthru
        _
      %p2761 = scmp.le.s32.totalorder 2, %s17
      // Predicated region
      $region57: #{tpu_custom_call.1} parent=5 // pred_check
        %p2762 = pneg %p2761
      $region58: #{tpu_custom_call.1} parent=5 // pred_check_branch
        %2764 = sbr.rel (%p2762) target = $region60
      $region59: #{tpu_custom_call.1} parent=5 // pred_region
        %s2765 = ssub.s32 %s17, 2
        // Predicated region
        $region61: #{tpu_custom_call.1} parent=59 // pred_check
          %p2766 = pneg %p198
        $region62: #{tpu_custom_call.1} parent=59 // pred_check_branch
          %2768 = sbr.rel (%p2766) target = $region64
        $region63: #{tpu_custom_call.1} parent=59 // pred_region
          %s2769 = sand.u32 %s183, 1
          %s2770 = scalar_lea.sflag [#allocation4], %s2769
          %s2771 = sand.u32 %s183, 1
          %s2772 = smul.addr %s2771, 128
          %s2773 = scalar_lea.vmem [#allocation5], %s2772
          %2774 = dma.done %s2770, 2048
        $region64: #{tpu_custom_call.1} parent=59 // pred_fallthru
          _
      $region60: #{tpu_custom_call.1} parent=5 // pred_fallthru
        _
    $region6: #{tpu_custom_call.1} parent=1 // loop_footer
      %s21 = sadd.s32 1, %s17
    $region7: #{tpu_custom_call.1} parent=1 // loop_footer_branch
      %16 = sbr.rel target = $region3
    $region8: #{tpu_custom_call.1} parent=1 // loop_exit
      _
    %2775 = vsyncpa [#allocation3], 1
    %s2776 = scalar_lea.sflag [#allocation3], 1
    %2777 = vsyncpa %s2776, 1
    %2778 = vsyncpa [#allocation4], 1
    %s2779 = scalar_lea.sflag [#allocation4], 1
    %2780 = vsyncpa %s2779, 1

</llo_original>
